<compile_context>
chip_gen: v5e
topology: v5e:2x2
jax: 0.10.0
libtpu: 0.0.40
codegen_flags: <defaults>
</compile_context>

<pallas_src>
import functools

import jax
import jax.numpy as jnp
from jax.experimental import pallas as pl
from jax.experimental.pallas import tpu as pltpu


# ---------------------------------------------------------------------------
# Fused bottleneck-layer kernel
# ---------------------------------------------------------------------------
def _fused_layer_kernel(*refs, has_proj, Ho, Wo, hid, up):
    if has_proj:
        (x_ref, w1_ref, b1_ref, w2_ref, b2_ref, w3_ref, b3_ref,
         wi_ref, bi_ref, o_ref, h1p_ref, acc_ref) = refs
    else:
        (x_ref, w1_ref, b1_ref, w2_ref, b2_ref, w3_ref, b3_ref,
         o_ref, h1p_ref, acc_ref) = refs
        wi_ref = bi_ref = None

    M = Ho * Wo
    cin_eff = x_ref.shape[-1]
    # Input tile for this image: (1, Ho, sh, Wo, cin_eff) -> (M, cin_eff).
    xs = x_ref[...].reshape(M, cin_eff)

    # --- weight_layer1: 1x1 conv (BN scale folded into w1) + bias + ReLU ---
    h1 = jnp.dot(xs, w1_ref[...], preferred_element_type=jnp.float32)
    h1 = jnp.maximum(h1 + b1_ref[...], 0.0)

    # Stage h1 into a zero-padded VMEM scratch (halo for the 3x3, pad=1).
    h1p_ref[...] = jnp.zeros_like(h1p_ref)
    h1p_ref[1:Ho + 1, 1:Wo + 1, :] = h1.reshape(Ho, Wo, hid)

    # --- weight_layer2: 3x3 conv (pad=1) as 9 shifted matmuls --------------
    acc_ref[...] = jnp.zeros_like(acc_ref)
    for dh in range(3):
        for dw in range(3):
            win = h1p_ref[dh:dh + Ho, dw:dw + Wo, :].reshape(M, hid)
            acc_ref[...] += jnp.dot(win, w2_ref[dh * 3 + dw],
                                    preferred_element_type=jnp.float32)
    h2 = jnp.maximum(acc_ref[...] + b2_ref[...], 0.0)

    # --- weight_layer3: 1x1 conv + bias (no ReLU) ---------------------------
    h3 = jnp.dot(h2, w3_ref[...], preferred_element_type=jnp.float32) + b3_ref[...]

    # --- identity / downsample / up_scale, fused residual add + ReLU -------
    if has_proj:
        idn = jnp.dot(xs, wi_ref[...], preferred_element_type=jnp.float32) + bi_ref[...]
    else:
        idn = xs.astype(jnp.float32)  # passthrough: Cin == up, stride 1
    out = jnp.maximum(h3 + idn, 0.0)
    o_ref[...] = out.reshape(1, Ho, Wo, up).astype(o_ref.dtype)


def _pinned(shape):
    # Weight/bias spec: constant index_map -> DMA'd once, reused every step.
    return pl.BlockSpec(shape, lambda b: (0,) * len(shape))


def fused_bottleneck_layer(x_packed, lp, out_dtype):
    """x_packed: (N, Ho, sh, Wo, sw*Cin) -- free reshape done by the caller."""
    N, Ho, _sh, Wo, cin_eff = x_packed.shape
    hid = lp['w1'].shape[1]
    up = lp['w3'].shape[1]
    has_proj = lp['wi'] is not None

    kernel = functools.partial(_fused_layer_kernel,
                               has_proj=has_proj, Ho=Ho, Wo=Wo, hid=hid, up=up)

    in_specs = [
        # Picks block 0 along the "sh" dim -> only the even rows are DMA'd in.
        pl.BlockSpec((1, Ho, 1, Wo, cin_eff), lambda b: (b, 0, 0, 0, 0)),
        _pinned(lp['w1'].shape), _pinned(lp['b1'].shape),
        _pinned(lp['w2'].shape), _pinned(lp['b2'].shape),
        _pinned(lp['w3'].shape), _pinned(lp['b3'].shape),
    ]
    args = [x_packed, lp['w1'], lp['b1'], lp['w2'], lp['b2'], lp['w3'], lp['b3']]
    if has_proj:
        in_specs += [_pinned(lp['wi'].shape), _pinned(lp['bi'].shape)]
        args += [lp['wi'], lp['bi']]

    return pl.pallas_call(
        kernel,
        out_shape=jax.ShapeDtypeStruct((N, Ho, Wo, up), out_dtype),
        grid=(N,),
        in_specs=in_specs,
        out_specs=pl.BlockSpec((1, Ho, Wo, up), lambda b: (b, 0, 0, 0)),
        scratch_shapes=[
            pltpu.VMEM((Ho + 2, Wo + 2, hid), jnp.float32),  # padded h1 (3x3 halo)
            pltpu.VMEM((Ho * Wo, hid), jnp.float32),         # 3x3 f32 accumulator
        ],
        compiler_params=pltpu.CompilerParams(
            dimension_semantics=("parallel",),        # megacore on v7x
            vmem_limit_bytes=32 * 1024 * 1024,        # explicit, safe on v5e/v6e/v7x
        ),
    )(*args)


# ---------------------------------------------------------------------------
# Parameters (deterministic synthetic init, inference-mode BN folded)
# ---------------------------------------------------------------------------
def _fold_bn(gamma, beta, mean, var, eps=1e-5):
    scale = gamma / jnp.sqrt(var + eps)
    bias = beta - mean * scale
    return scale[None, :], bias[None, :]


def _init_bn(key, c):
    k1, k2, k3, k4 = jax.random.split(key, 4)
    gamma = 1.0 + 0.1 * jax.random.normal(k1, (c,), jnp.float32)
    beta = 0.1 * jax.random.normal(k2, (c,), jnp.float32)
    mean = 0.05 * jax.random.normal(k3, (c,), jnp.float32)
    var = 1.0 + 0.1 * jnp.abs(jax.random.normal(k4, (c,), jnp.float32))
    return _fold_bn(gamma, beta, mean, var)


def init_layer_params(key, in_c, hid_c, up_c, downsample):
    keys = jax.random.split(key, 8)
    p = {'downsample': downsample}
    p['w1'] = 0.1 * jax.random.normal(keys[0], (in_c, hid_c), jnp.float32)
    p['bn1'] = _init_bn(keys[1], hid_c)
    p['w2'] = 0.1 * jax.random.normal(keys[2], (9, hid_c, hid_c), jnp.float32)
    p['bn2'] = _init_bn(keys[3], hid_c)
    p['w3'] = 0.1 * jax.random.normal(keys[4], (hid_c, up_c), jnp.float32)
    p['bn3'] = _init_bn(keys[5], up_c)
    if downsample:
        p['wd'] = 0.1 * jax.random.normal(keys[6], (in_c, up_c), jnp.float32)
        p['bnd'] = _init_bn(keys[7], up_c)
    elif in_c != up_c:
        p['wu'] = 0.1 * jax.random.normal(keys[6], (in_c, up_c), jnp.float32)
        p['bnu'] = _init_bn(keys[7], up_c)
    return p


def _prep_layer(p):
    """Fold BN scale into conv weights; pack stride-2 as doubled input channels."""
    lp = {'downsample': p['downsample']}
    s1, b1 = p['bn1']
    s2, b2 = p['bn2']
    s3, b3 = p['bn3']
    w1 = p['w1'] * s1                 # scale output channels (columns)
    w2 = p['w2'] * s2[None]           # (9, hid, hid) * (1, 1, hid)
    w3 = p['w3'] * s3
    if p['downsample']:
        # Packed input layout is [even-column channels | odd-column channels];
        # zero rows drop the odd columns -> exact stride-2 1x1 conv.
        w1 = jnp.concatenate([w1, jnp.zeros_like(w1)], axis=0)
    lp.update(w1=w1, b1=b1, w2=w2, b2=b2, w3=w3, b3=b3)
    if p['downsample']:
        si, bi = p['bnd']
        wi = p['wd'] * si
        lp.update(wi=jnp.concatenate([wi, jnp.zeros_like(wi)], axis=0), bi=bi)
    elif 'wu' in p:
        si, bi = p['bnu']
        lp.update(wi=p['wu'] * si, bi=bi)
    else:
        lp.update(wi=None, bi=None)
    return lp


# ---------------------------------------------------------------------------
# Forward
# ---------------------------------------------------------------------------
def bottleneck_layer_forward(x, lp):
    N, H, W, Cin = x.shape
    if lp['downsample']:
        assert H % 2 == 0 and W % 2 == 0, "downsample needs even H, W"
        Ho, Wo = H // 2, W // 2
        # Free row-major reshape; BlockSpec + zero-padded weight rows implement
        # the stride-2 subsample with no extra HBM copy.
        x_in = x.reshape(N, Ho, 2, Wo, 2 * Cin)
    else:
        Ho, Wo = H, W
        x_in = x.reshape(N, Ho, 1, Wo, Cin)
    return fused_bottleneck_layer(x_in, lp, out_dtype=x.dtype)


def encoder_bottleneck_block(x_nchw, params_list):
    x = jnp.transpose(x_nchw, (0, 2, 3, 1))   # NCHW -> NHWC (channels in lanes)
    for p in params_list:
        x = bottleneck_layer_forward(x, _prep_layer(p))
    return jnp.transpose(x, (0, 3, 1, 2))     # NHWC -> NCHW


# ---------------------------------------------------------------------------
# Pure-JAX reference (for correctness check only)
# ---------------------------------------------------------------------------
def _ref_layer(x, p):
    dn = ('NHWC', 'HWIO', 'NHWC')
    hi = jax.lax.Precision.HIGHEST
    Cin, hid = p['w1'].shape
    up = p['w3'].shape[1]
    stride = (2, 2) if p['downsample'] else (1, 1)

    h = jax.lax.conv_general_dilated(x, p['w1'].reshape(1, 1, Cin, hid), stride,
                                     'VALID', dimension_numbers=dn, precision=hi)
    h = jnp.maximum(h * p['bn1'][0] + p['bn1'][1], 0.0)
    h = jax.lax.conv_general_dilated(h, p['w2'].reshape(3, 3, hid, hid), (1, 1),
                                     ((1, 1), (1, 1)), dimension_numbers=dn, precision=hi)
    h = jnp.maximum(h * p['bn2'][0] + p['bn2'][1], 0.0)
    h = jax.lax.conv_general_dilated(h, p['w3'].reshape(1, 1, hid, up), (1, 1),
                                     'VALID', dimension_numbers=dn, precision=hi)
    h = h * p['bn3'][0] + p['bn3'][1]

    if p['downsample']:
        idn = jax.lax.conv_general_dilated(x, p['wd'].reshape(1, 1, Cin, up), (2, 2),
                                           'VALID', dimension_numbers=dn, precision=hi)
        idn = idn * p['bnd'][0] + p['bnd'][1]
    elif 'wu' in p:
        idn = jax.lax.conv_general_dilated(x, p['wu'].reshape(1, 1, Cin, up), (1, 1),
                                           'VALID', dimension_numbers=dn, precision=hi)
        idn = idn * p['bnu'][0] + p['bnu'][1]
    else:
        idn = x
    return jnp.maximum(h + idn, 0.0)


def _ref_block(x_nchw, params_list):
    x = jnp.transpose(x_nchw, (0, 2, 3, 1))
    for p in params_list:
        x = _ref_layer(x, p)
    return jnp.transpose(x, (0, 3, 1, 2))


# ---------------------------------------------------------------------------
if __name__ == "__main__":
    key = jax.random.PRNGKey(0)
    kx, kp = jax.random.split(key)

    N, Cin, H, W = 2, 4, 16, 16
    hidden, up, layers = 8, 16, 2

    x = jax.random.normal(kx, (N, Cin, H, W), jnp.float32)

    lkeys = jax.random.split(kp, layers)
    params = []
    for i in range(layers):
        if i == 0:
            params.append(init_layer_params(lkeys[i], Cin, hidden, up, downsample=True))
        else:
            params.append(init_layer_params(lkeys[i], up, hidden, up, downsample=False))

    out = encoder_bottleneck_block(x, params)
    out = jax.block_until_ready(out)

    assert out.shape == (N, up, H // 2, W // 2), out.shape
    ref = _ref_block(x, params)
    err = float(jnp.max(jnp.abs(out - ref)))
    assert err < 1e-3, f"max abs err {err}"

    print("KERNEL_OK")
</pallas_src>

<mosaic_0001>
module attributes {stable_mosaic.version = 11 : i64} {
  func.func @_fused_layer_kernel(%arg0: i32, %arg1: memref<1x8x1x8x8xf32, #tpu.memory_space<vmem>>, %arg2: memref<8x8xf32, #tpu.memory_space<vmem>>, %arg3: memref<1x8xf32, #tpu.memory_space<vmem>>, %arg4: memref<9x8x8xf32, #tpu.memory_space<vmem>>, %arg5: memref<1x8xf32, #tpu.memory_space<vmem>>, %arg6: memref<8x16xf32, #tpu.memory_space<vmem>>, %arg7: memref<1x16xf32, #tpu.memory_space<vmem>>, %arg8: memref<8x16xf32, #tpu.memory_space<vmem>>, %arg9: memref<1x16xf32, #tpu.memory_space<vmem>>, %arg10: memref<1x8x8x16xf32, #tpu.memory_space<vmem>>, %arg11: memref<10x10x8xf32, #tpu.memory_space<vmem>>, %arg12: memref<64x8xf32, #tpu.memory_space<vmem>>) attributes {dimension_semantics = [#tpu.dimension_semantics<parallel>], iteration_bounds = array<i64: 2>, scalar_prefetch = 0 : i64, scratch_operands = 2 : i64, tpu.core_type = #tpu.core_type<tc>, window_params = [{transform_indices = @transform_0, window_bounds = array<i64: 1, 8, 1, 8, 8>}, {pipeline_mode = #tpu.pipeline_mode<synchronous>, transform_indices = @transform_1, window_bounds = array<i64: 8, 8>}, {pipeline_mode = #tpu.pipeline_mode<synchronous>, transform_indices = @transform_2, window_bounds = array<i64: 1, 8>}, {pipeline_mode = #tpu.pipeline_mode<synchronous>, transform_indices = @transform_3, window_bounds = array<i64: 9, 8, 8>}, {pipeline_mode = #tpu.pipeline_mode<synchronous>, transform_indices = @transform_4, window_bounds = array<i64: 1, 8>}, {pipeline_mode = #tpu.pipeline_mode<synchronous>, transform_indices = @transform_5, window_bounds = array<i64: 8, 16>}, {pipeline_mode = #tpu.pipeline_mode<synchronous>, transform_indices = @transform_6, window_bounds = array<i64: 1, 16>}, {pipeline_mode = #tpu.pipeline_mode<synchronous>, transform_indices = @transform_7, window_bounds = array<i64: 8, 16>}, {pipeline_mode = #tpu.pipeline_mode<synchronous>, transform_indices = @transform_8, window_bounds = array<i64: 1, 16>}, {transform_indices = @transform_9, window_bounds = array<i64: 1, 8, 8, 16>}]} {
    %c0 = arith.constant 0 : index
    %c0_0 = arith.constant 0 : index
    %c0_1 = arith.constant 0 : index
    %c0_2 = arith.constant 0 : index
    %c0_3 = arith.constant 0 : index
    %0 = vector.load %arg1[%c0, %c0_0, %c0_1, %c0_2, %c0_3] : memref<1x8x1x8x8xf32, #tpu.memory_space<vmem>>, vector<1x8x1x8x8xf32>
    %1 = vector.shape_cast %0 : vector<1x8x1x8x8xf32> to vector<64x8xf32>
    %c0_4 = arith.constant 0 : index
    %c0_5 = arith.constant 0 : index
    %2 = vector.load %arg2[%c0_4, %c0_5] : memref<8x8xf32, #tpu.memory_space<vmem>>, vector<8x8xf32>
    %cst = arith.constant dense<0.000000e+00> : vector<64x8xf32>
    %3 = tpu.matmul %1, %2, %cst {dimension_numbers = #tpu.dot_dimension_numbers<[1], [0], [0], [1], [0, 0, 1, 1], [], []>} : vector<64x8xf32>, vector<8x8xf32>, vector<64x8xf32> -> vector<64x8xf32>
    %c0_6 = arith.constant 0 : index
    %c0_7 = arith.constant 0 : index
    %4 = vector.load %arg3[%c0_6, %c0_7] : memref<1x8xf32, #tpu.memory_space<vmem>>, vector<1x8xf32>
    %5 = vector.broadcast %4 : vector<1x8xf32> to vector<64x8xf32>
    %6 = arith.addf %3, %5 : vector<64x8xf32>
    %cst_8 = arith.constant 0.000000e+00 : f32
    %7 = vector.broadcast %cst_8 : f32 to vector<64x8xf32>
    %8 = arith.maximumf %6, %7 : vector<64x8xf32>
    %cst_9 = arith.constant 0.000000e+00 : f32
    %9 = vector.broadcast %cst_9 : f32 to vector<10x10x8xf32>
    %c0_10 = arith.constant 0 : index
    %c0_11 = arith.constant 0 : index
    %c0_12 = arith.constant 0 : index
    %10 = vector.load %arg11[%c0_10, %c0_11, %c0_12] : memref<10x10x8xf32, #tpu.memory_space<vmem>>, vector<10x10x8xf32>
    tpu.vector_store %arg11[%c0_10, %c0_11, %c0_12], %9 {strides = array<i32>} : memref<10x10x8xf32, #tpu.memory_space<vmem>>, vector<10x10x8xf32>,
    %11 = vector.shape_cast %8 : vector<64x8xf32> to vector<8x8x8xf32>
    %c1 = arith.constant 1 : index
    %c1_13 = arith.constant 1 : index
    %c0_14 = arith.constant 0 : index
    %12 = vector.load %arg11[%c1, %c1_13, %c0_14] : memref<10x10x8xf32, #tpu.memory_space<vmem>>, vector<8x8x8xf32>
    tpu.vector_store %arg11[%c1, %c1_13, %c0_14], %11 {strides = array<i32>} : memref<10x10x8xf32, #tpu.memory_space<vmem>>, vector<8x8x8xf32>,
    %cst_15 = arith.constant 0.000000e+00 : f32
    %13 = vector.broadcast %cst_15 : f32 to vector<64x8xf32>
    %c0_16 = arith.constant 0 : index
    %c0_17 = arith.constant 0 : index
    %14 = vector.load %arg12[%c0_16, %c0_17] : memref<64x8xf32, #tpu.memory_space<vmem>>, vector<64x8xf32>
    tpu.vector_store %arg12[%c0_16, %c0_17], %13 {strides = array<i32>} : memref<64x8xf32, #tpu.memory_space<vmem>>, vector<64x8xf32>,
    %c0_18 = arith.constant 0 : index
    %c0_19 = arith.constant 0 : index
    %c0_20 = arith.constant 0 : index
    %15 = vector.load %arg11[%c0_18, %c0_19, %c0_20] : memref<10x10x8xf32, #tpu.memory_space<vmem>>, vector<8x8x8xf32>
    %16 = vector.shape_cast %15 : vector<8x8x8xf32> to vector<64x8xf32>
    %c0_21 = arith.constant 0 : index
    %c0_22 = arith.constant 0 : index
    %17 = vector.load %arg12[%c0_21, %c0_22] : memref<64x8xf32, #tpu.memory_space<vmem>>, vector<64x8xf32>
    %c0_23 = arith.constant 0 : index
    %c0_24 = arith.constant 0 : index
    %c0_25 = arith.constant 0 : index
    %18 = vector.load %arg4[%c0_23, %c0_24, %c0_25] : memref<9x8x8xf32, #tpu.memory_space<vmem>>, vector<1x8x8xf32>
    %19 = vector.shape_cast %18 : vector<1x8x8xf32> to vector<8x8xf32>
    %cst_26 = arith.constant dense<0.000000e+00> : vector<64x8xf32>
    %20 = tpu.matmul %16, %19, %cst_26 {dimension_numbers = #tpu.dot_dimension_numbers<[1], [0], [0], [1], [0, 0, 1, 1], [], []>} : vector<64x8xf32>, vector<8x8xf32>, vector<64x8xf32> -> vector<64x8xf32>
    %21 = arith.addf %17, %20 : vector<64x8xf32>
    %c0_27 = arith.constant 0 : index
    %c0_28 = arith.constant 0 : index
    %22 = vector.load %arg12[%c0_27, %c0_28] : memref<64x8xf32, #tpu.memory_space<vmem>>, vector<64x8xf32>
    tpu.vector_store %arg12[%c0_27, %c0_28], %21 {strides = array<i32>} : memref<64x8xf32, #tpu.memory_space<vmem>>, vector<64x8xf32>,
    %c0_29 = arith.constant 0 : index
    %c1_30 = arith.constant 1 : index
    %c0_31 = arith.constant 0 : index
    %23 = vector.load %arg11[%c0_29, %c1_30, %c0_31] : memref<10x10x8xf32, #tpu.memory_space<vmem>>, vector<8x8x8xf32>
    %24 = vector.shape_cast %23 : vector<8x8x8xf32> to vector<64x8xf32>
    %c0_32 = arith.constant 0 : index
    %c0_33 = arith.constant 0 : index
    %25 = vector.load %arg12[%c0_32, %c0_33] : memref<64x8xf32, #tpu.memory_space<vmem>>, vector<64x8xf32>
    %c1_34 = arith.constant 1 : index
    %c0_35 = arith.constant 0 : index
    %c0_36 = arith.constant 0 : index
    %26 = vector.load %arg4[%c1_34, %c0_35, %c0_36] : memref<9x8x8xf32, #tpu.memory_space<vmem>>, vector<1x8x8xf32>
    %27 = vector.shape_cast %26 : vector<1x8x8xf32> to vector<8x8xf32>
    %cst_37 = arith.constant dense<0.000000e+00> : vector<64x8xf32>
    %28 = tpu.matmul %24, %27, %cst_37 {dimension_numbers = #tpu.dot_dimension_numbers<[1], [0], [0], [1], [0, 0, 1, 1], [], []>} : vector<64x8xf32>, vector<8x8xf32>, vector<64x8xf32> -> vector<64x8xf32>
    %29 = arith.addf %25, %28 : vector<64x8xf32>
    %c0_38 = arith.constant 0 : index
    %c0_39 = arith.constant 0 : index
    %30 = vector.load %arg12[%c0_38, %c0_39] : memref<64x8xf32, #tpu.memory_space<vmem>>, vector<64x8xf32>
    tpu.vector_store %arg12[%c0_38, %c0_39], %29 {strides = array<i32>} : memref<64x8xf32, #tpu.memory_space<vmem>>, vector<64x8xf32>,
    %c0_40 = arith.constant 0 : index
    %c2 = arith.constant 2 : index
    %c0_41 = arith.constant 0 : index
    %31 = vector.load %arg11[%c0_40, %c2, %c0_41] : memref<10x10x8xf32, #tpu.memory_space<vmem>>, vector<8x8x8xf32>
    %32 = vector.shape_cast %31 : vector<8x8x8xf32> to vector<64x8xf32>
    %c0_42 = arith.constant 0 : index
    %c0_43 = arith.constant 0 : index
    %33 = vector.load %arg12[%c0_42, %c0_43] : memref<64x8xf32, #tpu.memory_space<vmem>>, vector<64x8xf32>
    %c2_44 = arith.constant 2 : index
    %c0_45 = arith.constant 0 : index
    %c0_46 = arith.constant 0 : index
    %34 = vector.load %arg4[%c2_44, %c0_45, %c0_46] : memref<9x8x8xf32, #tpu.memory_space<vmem>>, vector<1x8x8xf32>
    %35 = vector.shape_cast %34 : vector<1x8x8xf32> to vector<8x8xf32>
    %cst_47 = arith.constant dense<0.000000e+00> : vector<64x8xf32>
    %36 = tpu.matmul %32, %35, %cst_47 {dimension_numbers = #tpu.dot_dimension_numbers<[1], [0], [0], [1], [0, 0, 1, 1], [], []>} : vector<64x8xf32>, vector<8x8xf32>, vector<64x8xf32> -> vector<64x8xf32>
    %37 = arith.addf %33, %36 : vector<64x8xf32>
    %c0_48 = arith.constant 0 : index
    %c0_49 = arith.constant 0 : index
    %38 = vector.load %arg12[%c0_48, %c0_49] : memref<64x8xf32, #tpu.memory_space<vmem>>, vector<64x8xf32>
    tpu.vector_store %arg12[%c0_48, %c0_49], %37 {strides = array<i32>} : memref<64x8xf32, #tpu.memory_space<vmem>>, vector<64x8xf32>,
    %c1_50 = arith.constant 1 : index
    %c0_51 = arith.constant 0 : index
    %c0_52 = arith.constant 0 : index
    %39 = vector.load %arg11[%c1_50, %c0_51, %c0_52] : memref<10x10x8xf32, #tpu.memory_space<vmem>>, vector<8x8x8xf32>
    %40 = vector.shape_cast %39 : vector<8x8x8xf32> to vector<64x8xf32>
    %c0_53 = arith.constant 0 : index
    %c0_54 = arith.constant 0 : index
    %41 = vector.load %arg12[%c0_53, %c0_54] : memref<64x8xf32, #tpu.memory_space<vmem>>, vector<64x8xf32>
    %c3 = arith.constant 3 : index
    %c0_55 = arith.constant 0 : index
    %c0_56 = arith.constant 0 : index
    %42 = vector.load %arg4[%c3, %c0_55, %c0_56] : memref<9x8x8xf32, #tpu.memory_space<vmem>>, vector<1x8x8xf32>
    %43 = vector.shape_cast %42 : vector<1x8x8xf32> to vector<8x8xf32>
    %cst_57 = arith.constant dense<0.000000e+00> : vector<64x8xf32>
    %44 = tpu.matmul %40, %43, %cst_57 {dimension_numbers = #tpu.dot_dimension_numbers<[1], [0], [0], [1], [0, 0, 1, 1], [], []>} : vector<64x8xf32>, vector<8x8xf32>, vector<64x8xf32> -> vector<64x8xf32>
    %45 = arith.addf %41, %44 : vector<64x8xf32>
    %c0_58 = arith.constant 0 : index
    %c0_59 = arith.constant 0 : index
    %46 = vector.load %arg12[%c0_58, %c0_59] : memref<64x8xf32, #tpu.memory_space<vmem>>, vector<64x8xf32>
    tpu.vector_store %arg12[%c0_58, %c0_59], %45 {strides = array<i32>} : memref<64x8xf32, #tpu.memory_space<vmem>>, vector<64x8xf32>,
    %c1_60 = arith.constant 1 : index
    %c1_61 = arith.constant 1 : index
    %c0_62 = arith.constant 0 : index
    %47 = vector.load %arg11[%c1_60, %c1_61, %c0_62] : memref<10x10x8xf32, #tpu.memory_space<vmem>>, vector<8x8x8xf32>
    %48 = vector.shape_cast %47 : vector<8x8x8xf32> to vector<64x8xf32>
    %c0_63 = arith.constant 0 : index
    %c0_64 = arith.constant 0 : index
    %49 = vector.load %arg12[%c0_63, %c0_64] : memref<64x8xf32, #tpu.memory_space<vmem>>, vector<64x8xf32>
    %c4 = arith.constant 4 : index
    %c0_65 = arith.constant 0 : index
    %c0_66 = arith.constant 0 : index
    %50 = vector.load %arg4[%c4, %c0_65, %c0_66] : memref<9x8x8xf32, #tpu.memory_space<vmem>>, vector<1x8x8xf32>
    %51 = vector.shape_cast %50 : vector<1x8x8xf32> to vector<8x8xf32>
    %cst_67 = arith.constant dense<0.000000e+00> : vector<64x8xf32>
    %52 = tpu.matmul %48, %51, %cst_67 {dimension_numbers = #tpu.dot_dimension_numbers<[1], [0], [0], [1], [0, 0, 1, 1], [], []>} : vector<64x8xf32>, vector<8x8xf32>, vector<64x8xf32> -> vector<64x8xf32>
    %53 = arith.addf %49, %52 : vector<64x8xf32>
    %c0_68 = arith.constant 0 : index
    %c0_69 = arith.constant 0 : index
    %54 = vector.load %arg12[%c0_68, %c0_69] : memref<64x8xf32, #tpu.memory_space<vmem>>, vector<64x8xf32>
    tpu.vector_store %arg12[%c0_68, %c0_69], %53 {strides = array<i32>} : memref<64x8xf32, #tpu.memory_space<vmem>>, vector<64x8xf32>,
    %c1_70 = arith.constant 1 : index
    %c2_71 = arith.constant 2 : index
    %c0_72 = arith.constant 0 : index
    %55 = vector.load %arg11[%c1_70, %c2_71, %c0_72] : memref<10x10x8xf32, #tpu.memory_space<vmem>>, vector<8x8x8xf32>
    %56 = vector.shape_cast %55 : vector<8x8x8xf32> to vector<64x8xf32>
    %c0_73 = arith.constant 0 : index
    %c0_74 = arith.constant 0 : index
    %57 = vector.load %arg12[%c0_73, %c0_74] : memref<64x8xf32, #tpu.memory_space<vmem>>, vector<64x8xf32>
    %c5 = arith.constant 5 : index
    %c0_75 = arith.constant 0 : index
    %c0_76 = arith.constant 0 : index
    %58 = vector.load %arg4[%c5, %c0_75, %c0_76] : memref<9x8x8xf32, #tpu.memory_space<vmem>>, vector<1x8x8xf32>
    %59 = vector.shape_cast %58 : vector<1x8x8xf32> to vector<8x8xf32>
    %cst_77 = arith.constant dense<0.000000e+00> : vector<64x8xf32>
    %60 = tpu.matmul %56, %59, %cst_77 {dimension_numbers = #tpu.dot_dimension_numbers<[1], [0], [0], [1], [0, 0, 1, 1], [], []>} : vector<64x8xf32>, vector<8x8xf32>, vector<64x8xf32> -> vector<64x8xf32>
    %61 = arith.addf %57, %60 : vector<64x8xf32>
    %c0_78 = arith.constant 0 : index
    %c0_79 = arith.constant 0 : index
    %62 = vector.load %arg12[%c0_78, %c0_79] : memref<64x8xf32, #tpu.memory_space<vmem>>, vector<64x8xf32>
    tpu.vector_store %arg12[%c0_78, %c0_79], %61 {strides = array<i32>} : memref<64x8xf32, #tpu.memory_space<vmem>>, vector<64x8xf32>,
    %c2_80 = arith.constant 2 : index
    %c0_81 = arith.constant 0 : index
    %c0_82 = arith.constant 0 : index
    %63 = vector.load %arg11[%c2_80, %c0_81, %c0_82] : memref<10x10x8xf32, #tpu.memory_space<vmem>>, vector<8x8x8xf32>
    %64 = vector.shape_cast %63 : vector<8x8x8xf32> to vector<64x8xf32>
    %c0_83 = arith.constant 0 : index
    %c0_84 = arith.constant 0 : index
    %65 = vector.load %arg12[%c0_83, %c0_84] : memref<64x8xf32, #tpu.memory_space<vmem>>, vector<64x8xf32>
    %c6 = arith.constant 6 : index
    %c0_85 = arith.constant 0 : index
    %c0_86 = arith.constant 0 : index
    %66 = vector.load %arg4[%c6, %c0_85, %c0_86] : memref<9x8x8xf32, #tpu.memory_space<vmem>>, vector<1x8x8xf32>
    %67 = vector.shape_cast %66 : vector<1x8x8xf32> to vector<8x8xf32>
    %cst_87 = arith.constant dense<0.000000e+00> : vector<64x8xf32>
    %68 = tpu.matmul %64, %67, %cst_87 {dimension_numbers = #tpu.dot_dimension_numbers<[1], [0], [0], [1], [0, 0, 1, 1], [], []>} : vector<64x8xf32>, vector<8x8xf32>, vector<64x8xf32> -> vector<64x8xf32>
    %69 = arith.addf %65, %68 : vector<64x8xf32>
    %c0_88 = arith.constant 0 : index
    %c0_89 = arith.constant 0 : index
    %70 = vector.load %arg12[%c0_88, %c0_89] : memref<64x8xf32, #tpu.memory_space<vmem>>, vector<64x8xf32>
    tpu.vector_store %arg12[%c0_88, %c0_89], %69 {strides = array<i32>} : memref<64x8xf32, #tpu.memory_space<vmem>>, vector<64x8xf32>,
    %c2_90 = arith.constant 2 : index
    %c1_91 = arith.constant 1 : index
    %c0_92 = arith.constant 0 : index
    %71 = vector.load %arg11[%c2_90, %c1_91, %c0_92] : memref<10x10x8xf32, #tpu.memory_space<vmem>>, vector<8x8x8xf32>
    %72 = vector.shape_cast %71 : vector<8x8x8xf32> to vector<64x8xf32>
    %c0_93 = arith.constant 0 : index
    %c0_94 = arith.constant 0 : index
    %73 = vector.load %arg12[%c0_93, %c0_94] : memref<64x8xf32, #tpu.memory_space<vmem>>, vector<64x8xf32>
    %c7 = arith.constant 7 : index
    %c0_95 = arith.constant 0 : index
    %c0_96 = arith.constant 0 : index
    %74 = vector.load %arg4[%c7, %c0_95, %c0_96] : memref<9x8x8xf32, #tpu.memory_space<vmem>>, vector<1x8x8xf32>
    %75 = vector.shape_cast %74 : vector<1x8x8xf32> to vector<8x8xf32>
    %cst_97 = arith.constant dense<0.000000e+00> : vector<64x8xf32>
    %76 = tpu.matmul %72, %75, %cst_97 {dimension_numbers = #tpu.dot_dimension_numbers<[1], [0], [0], [1], [0, 0, 1, 1], [], []>} : vector<64x8xf32>, vector<8x8xf32>, vector<64x8xf32> -> vector<64x8xf32>
    %77 = arith.addf %73, %76 : vector<64x8xf32>
    %c0_98 = arith.constant 0 : index
    %c0_99 = arith.constant 0 : index
    %78 = vector.load %arg12[%c0_98, %c0_99] : memref<64x8xf32, #tpu.memory_space<vmem>>, vector<64x8xf32>
    tpu.vector_store %arg12[%c0_98, %c0_99], %77 {strides = array<i32>} : memref<64x8xf32, #tpu.memory_space<vmem>>, vector<64x8xf32>,
    %c2_100 = arith.constant 2 : index
    %c2_101 = arith.constant 2 : index
    %c0_102 = arith.constant 0 : index
    %79 = vector.load %arg11[%c2_100, %c2_101, %c0_102] : memref<10x10x8xf32, #tpu.memory_space<vmem>>, vector<8x8x8xf32>
    %80 = vector.shape_cast %79 : vector<8x8x8xf32> to vector<64x8xf32>
    %c0_103 = arith.constant 0 : index
    %c0_104 = arith.constant 0 : index
    %81 = vector.load %arg12[%c0_103, %c0_104] : memref<64x8xf32, #tpu.memory_space<vmem>>, vector<64x8xf32>
    %c8 = arith.constant 8 : index
    %c0_105 = arith.constant 0 : index
    %c0_106 = arith.constant 0 : index
    %82 = vector.load %arg4[%c8, %c0_105, %c0_106] : memref<9x8x8xf32, #tpu.memory_space<vmem>>, vector<1x8x8xf32>
    %83 = vector.shape_cast %82 : vector<1x8x8xf32> to vector<8x8xf32>
    %cst_107 = arith.constant dense<0.000000e+00> : vector<64x8xf32>
    %84 = tpu.matmul %80, %83, %cst_107 {dimension_numbers = #tpu.dot_dimension_numbers<[1], [0], [0], [1], [0, 0, 1, 1], [], []>} : vector<64x8xf32>, vector<8x8xf32>, vector<64x8xf32> -> vector<64x8xf32>
    %85 = arith.addf %81, %84 : vector<64x8xf32>
    %c0_108 = arith.constant 0 : index
    %c0_109 = arith.constant 0 : index
    %86 = vector.load %arg12[%c0_108, %c0_109] : memref<64x8xf32, #tpu.memory_space<vmem>>, vector<64x8xf32>
    tpu.vector_store %arg12[%c0_108, %c0_109], %85 {strides = array<i32>} : memref<64x8xf32, #tpu.memory_space<vmem>>, vector<64x8xf32>,
    %c0_110 = arith.constant 0 : index
    %c0_111 = arith.constant 0 : index
    %87 = vector.load %arg12[%c0_110, %c0_111] : memref<64x8xf32, #tpu.memory_space<vmem>>, vector<64x8xf32>
    %c0_112 = arith.constant 0 : index
    %c0_113 = arith.constant 0 : index
    %88 = vector.load %arg5[%c0_112, %c0_113] : memref<1x8xf32, #tpu.memory_space<vmem>>, vector<1x8xf32>
    %89 = vector.broadcast %88 : vector<1x8xf32> to vector<64x8xf32>
    %90 = arith.addf %87, %89 : vector<64x8xf32>
    %cst_114 = arith.constant 0.000000e+00 : f32
    %91 = vector.broadcast %cst_114 : f32 to vector<64x8xf32>
    %92 = arith.maximumf %90, %91 : vector<64x8xf32>
    %c0_115 = arith.constant 0 : index
    %c0_116 = arith.constant 0 : index
    %93 = vector.load %arg6[%c0_115, %c0_116] : memref<8x16xf32, #tpu.memory_space<vmem>>, vector<8x16xf32>
    %cst_117 = arith.constant dense<0.000000e+00> : vector<64x16xf32>
    %94 = tpu.matmul %92, %93, %cst_117 {dimension_numbers = #tpu.dot_dimension_numbers<[1], [0], [0], [1], [0, 0, 1, 1], [], []>} : vector<64x8xf32>, vector<8x16xf32>, vector<64x16xf32> -> vector<64x16xf32>
    %c0_118 = arith.constant 0 : index
    %c0_119 = arith.constant 0 : index
    %95 = vector.load %arg7[%c0_118, %c0_119] : memref<1x16xf32, #tpu.memory_space<vmem>>, vector<1x16xf32>
    %96 = vector.broadcast %95 : vector<1x16xf32> to vector<64x16xf32>
    %97 = arith.addf %94, %96 : vector<64x16xf32>
    %c0_120 = arith.constant 0 : index
    %c0_121 = arith.constant 0 : index
    %98 = vector.load %arg8[%c0_120, %c0_121] : memref<8x16xf32, #tpu.memory_space<vmem>>, vector<8x16xf32>
    %cst_122 = arith.constant dense<0.000000e+00> : vector<64x16xf32>
    %99 = tpu.matmul %1, %98, %cst_122 {dimension_numbers = #tpu.dot_dimension_numbers<[1], [0], [0], [1], [0, 0, 1, 1], [], []>} : vector<64x8xf32>, vector<8x16xf32>, vector<64x16xf32> -> vector<64x16xf32>
    %c0_123 = arith.constant 0 : index
    %c0_124 = arith.constant 0 : index
    %100 = vector.load %arg9[%c0_123, %c0_124] : memref<1x16xf32, #tpu.memory_space<vmem>>, vector<1x16xf32>
    %101 = vector.broadcast %100 : vector<1x16xf32> to vector<64x16xf32>
    %102 = arith.addf %99, %101 : vector<64x16xf32>
    %103 = arith.addf %97, %102 : vector<64x16xf32>
    %cst_125 = arith.constant 0.000000e+00 : f32
    %104 = vector.broadcast %cst_125 : f32 to vector<64x16xf32>
    %105 = arith.maximumf %103, %104 : vector<64x16xf32>
    %106 = vector.shape_cast %105 : vector<64x16xf32> to vector<1x8x8x16xf32>
    %c0_126 = arith.constant 0 : index
    %c0_127 = arith.constant 0 : index
    %c0_128 = arith.constant 0 : index
    %c0_129 = arith.constant 0 : index
    %107 = vector.load %arg10[%c0_126, %c0_127, %c0_128, %c0_129] : memref<1x8x8x16xf32, #tpu.memory_space<vmem>>, vector<1x8x8x16xf32>
    tpu.vector_store %arg10[%c0_126, %c0_127, %c0_128, %c0_129], %106 {strides = array<i32>} : memref<1x8x8x16xf32, #tpu.memory_space<vmem>>, vector<1x8x8x16xf32>,
    return
  }
  func.func @transform_0(%arg0: i32) -> (i32, i32, i32, i32, i32) {
    %c0_i32 = arith.constant 0 : i32
    %c0_i32_0 = arith.constant 0 : i32
    %c0_i32_1 = arith.constant 0 : i32
    %c0_i32_2 = arith.constant 0 : i32
    %c0_i32_3 = arith.constant 0 : i32
    return %arg0, %c0_i32, %c0_i32_0, %c0_i32_1, %c0_i32_2 : i32, i32, i32, i32, i32
  }
  func.func @transform_1(%arg0: i32) -> (i32, i32) {
    %c0_i32 = arith.constant 0 : i32
    %c0_i32_0 = arith.constant 0 : i32
    %c0_i32_1 = arith.constant 0 : i32
    return %c0_i32, %c0_i32_0 : i32, i32
  }
  func.func @transform_2(%arg0: i32) -> (i32, i32) {
    %c0_i32 = arith.constant 0 : i32
    %c0_i32_0 = arith.constant 0 : i32
    %c0_i32_1 = arith.constant 0 : i32
    return %c0_i32, %c0_i32_0 : i32, i32
  }
  func.func @transform_3(%arg0: i32) -> (i32, i32, i32) {
    %c0_i32 = arith.constant 0 : i32
    %c0_i32_0 = arith.constant 0 : i32
    %c0_i32_1 = arith.constant 0 : i32
    %c0_i32_2 = arith.constant 0 : i32
    return %c0_i32, %c0_i32_0, %c0_i32_1 : i32, i32, i32
  }
  func.func @transform_4(%arg0: i32) -> (i32, i32) {
    %c0_i32 = arith.constant 0 : i32
    %c0_i32_0 = arith.constant 0 : i32
    %c0_i32_1 = arith.constant 0 : i32
    return %c0_i32, %c0_i32_0 : i32, i32
  }
  func.func @transform_5(%arg0: i32) -> (i32, i32) {
    %c0_i32 = arith.constant 0 : i32
    %c0_i32_0 = arith.constant 0 : i32
    %c0_i32_1 = arith.constant 0 : i32
    return %c0_i32, %c0_i32_0 : i32, i32
  }
  func.func @transform_6(%arg0: i32) -> (i32, i32) {
    %c0_i32 = arith.constant 0 : i32
    %c0_i32_0 = arith.constant 0 : i32
    %c0_i32_1 = arith.constant 0 : i32
    return %c0_i32, %c0_i32_0 : i32, i32
  }
  func.func @transform_7(%arg0: i32) -> (i32, i32) {
    %c0_i32 = arith.constant 0 : i32
    %c0_i32_0 = arith.constant 0 : i32
    %c0_i32_1 = arith.constant 0 : i32
    return %c0_i32, %c0_i32_0 : i32, i32
  }
  func.func @transform_8(%arg0: i32) -> (i32, i32) {
    %c0_i32 = arith.constant 0 : i32
    %c0_i32_0 = arith.constant 0 : i32
    %c0_i32_1 = arith.constant 0 : i32
    return %c0_i32, %c0_i32_0 : i32, i32
  }
  func.func @transform_9(%arg0: i32) -> (i32, i32, i32, i32) {
    %c0_i32 = arith.constant 0 : i32
    %c0_i32_0 = arith.constant 0 : i32
    %c0_i32_1 = arith.constant 0 : i32
    %c0_i32_2 = arith.constant 0 : i32
    return %arg0, %c0_i32, %c0_i32_0, %c0_i32_1 : i32, i32, i32, i32
  }
}

</mosaic_0001>

<llo_original>
// kernel: tpu_custom_call.1
$region0: #{tpu_custom_call.1}
  #allocation0 [shape = 'u32[]', space=smem, size = 0x4, offset = 0x4, fixed_abs, tag = 'smem constant byte address 0x4 - core index']
  #allocation1 [shape = 'u32[72,128]{1,0:T(1,128)}', space=vmem, size = 0x9000, scoped, tag = 'internal scratch']
  #allocation2 [shape = 'f32[10,10,8]{2,1,0:T(8,128)}', space=vmem, size = 0x14000, scoped, tag = 'scratch operand']
  #allocation3 [shape = 'f32[64,8]{1,0:T(8,128)}', space=vmem, size = 0x8000, scoped, tag = 'scratch operand']
  %s0 = inlined_call_operand.hbm [shape: f32[2,8,2,8,8], index: 0, kind: input, shape index: {}]
  %s1 = inlined_call_operand.vmem [shape: f32[8,8], index: 1, kind: input, shape index: {}]
  %s2 = inlined_call_operand.vmem [shape: f32[1,8], index: 2, kind: input, shape index: {}]
  %s3 = inlined_call_operand.vmem [shape: f32[9,8,8], index: 3, kind: input, shape index: {}]
  %s4 = inlined_call_operand.vmem [shape: f32[1,8], index: 4, kind: input, shape index: {}]
  %s5 = inlined_call_operand.vmem [shape: f32[8,16], index: 5, kind: input, shape index: {}]
  %s6 = inlined_call_operand.vmem [shape: f32[1,16], index: 6, kind: input, shape index: {}]
  %s7 = inlined_call_operand.vmem [shape: f32[8,16], index: 7, kind: input, shape index: {}]
  %s8 = inlined_call_operand.vmem [shape: f32[1,16], index: 8, kind: input, shape index: {}]
  %s9 = inlined_call_operand.hbm [shape: f32[2,8,8,16], index: 9, kind: output, shape index: {}]
  %s10 = sld [smem:[#allocation0]]
  $region73: #{tpu_custom_call.1} parent=0
    _
  %s12 = ssub.s32 1, %s10
  %s13 = scalar_select 0, %s12, %s10
  $region1: #{tpu_custom_call.1} parent=0
    #allocation4 [shape = 'u8[65536]{0}', space=vmem, size = 0x10000, scoped, tag = 'input window, operand 0']
    #allocation5 [shape = 's32[2]{0}', space=sflag, size = 0x8, scoped, tag = 'scoped memory for tpu_custom_call.1']
    #allocation6 [shape = 's32[2]{0}', space=sflag, size = 0x8, scoped, tag = 'scoped memory for tpu_custom_call.1']
    #allocation7 [shape = 'u8[65536]{0}', space=vmem, size = 0x10000, scoped, tag = 'output window, operand 0']
    %14 = vsyncpa [#allocation5], 0
    %s15 = scalar_lea.sflag [#allocation5], 1
    %16 = vsyncpa %s15, 0
    %17 = vsyncpa [#allocation6], 0
    %s18 = scalar_lea.sflag [#allocation6], 1
    %19 = vsyncpa %s18, 0
    loop: start=0, step=1, limit=4
    $region2: #{tpu_custom_call.1} parent=1 // loop_pre_header
      _
    $region3: #{tpu_custom_call.1} parent=1 // loop_header
      %s21 = sphi 0, %s25
      %p22 = scmp.ge.s32.totalorder %s21, 4
      %s31 = sphi 0, %s33
      %s34 = sphi 0, %s31
      %s35 = sphi 0, %s34
      %s51 = sphi 0, %s35
      %s55 = sphi 0, %s55
      %s57 = sphi 0, %s55
      %s58 = sphi 0, %s57
      %s72 = sphi 0, %s58
      %s76 = sphi 0, %s76
      %s78 = sphi 0, %s76
      %s79 = sphi 0, %s78
      %s93 = sphi 0, %s79
      %s97 = sphi 0, %s97
      %s99 = sphi 0, %s97
      %s100 = sphi 0, %s99
      %s114 = sphi 0, %s100
      %s118 = sphi 0, %s118
      %s120 = sphi 0, %s118
      %s121 = sphi 0, %s120
      %s135 = sphi 0, %s121
      %s139 = sphi 0, %s139
      %s141 = sphi 0, %s139
      %s142 = sphi 0, %s141
      %s156 = sphi 0, %s142
      %s160 = sphi 0, %s160
      %s162 = sphi 0, %s160
      %s163 = sphi 0, %s162
      %s177 = sphi 0, %s163
      %s181 = sphi 0, %s181
      %s183 = sphi 0, %s181
      %s184 = sphi 0, %s183
      %s198 = sphi 0, %s184
      %s202 = sphi 0, %s202
      %s204 = sphi 0, %s202
      %s205 = sphi 0, %s204
      %s219 = sphi 0, %s205
      %s225 = sphi 0, %s227
      %s228 = sphi 0, %s225
      %s229 = sphi 0, %s228
      %s245 = sphi 0, %s229
    $region4: #{tpu_custom_call.1} parent=1 // loop_header_branch
      %24 = sbr.rel (%p22) target = $region8
    $region5: #{tpu_custom_call.1} parent=1 // loop_body
      %s26 = ssub.s32 %s21, 1
      %s27 = ssub.s32 %s21, 2
      %s28 = sadd.s32 %s21, 1
      %s29 = ssub.s32 %s21, %s28
      %p30 = scmp.eq.s32.totalorder %s29, 0
      %s32 = sadd.s32 %s31, 1
      %s33 = scalar_select %p30, %s31, %s32
      %p36 = pneg %p30
      %p37 = scmp.eq.s32.totalorder %s21, 1
      %p38 = por %p36, %p37
      %p39 = scmp.ne.s32.totalorder %s31, %s34
      %p40 = scmp.eq.s32.totalorder %s21, 0
      %p41 = por %p39, %p40
      %p42 = scmp.ne.s32.totalorder %s31, %s34
      %p43 = scmp.eq.s32.totalorder %s26, 1
      %p44 = por %p42, %p43
      %p45 = scmp.ne.s32.totalorder %s34, %s35
      %p46 = scmp.eq.s32.totalorder %s26, 0
      %p47 = por %p45, %p46
      %p48 = scmp.ne.s32.totalorder %s34, %s35
      %p49 = scmp.eq.s32.totalorder %s27, 1
      %p50 = por %p48, %p49
      %p52 = scmp.ne.s32.totalorder %s35, %s51
      %p53 = scmp.eq.s32.totalorder %s27, 0
      %p54 = por %p52, %p53
      %s56 = sadd.s32 %s55, 1
      %p59 = scmp.eq.s32.totalorder %s21, 1
      %p60 = scmp.ne.s32.totalorder %s55, %s57
      %p61 = scmp.eq.s32.totalorder %s21, 0
      %p62 = por %p60, %p61
      %p63 = scmp.ne.s32.totalorder %s55, %s57
      %p64 = scmp.eq.s32.totalorder %s26, 1
      %p65 = por %p63, %p64
      %p66 = scmp.ne.s32.totalorder %s57, %s58
      %p67 = scmp.eq.s32.totalorder %s26, 0
      %p68 = por %p66, %p67
      %p69 = scmp.ne.s32.totalorder %s57, %s58
      %p70 = scmp.eq.s32.totalorder %s27, 1
      %p71 = por %p69, %p70
      %p73 = scmp.ne.s32.totalorder %s58, %s72
      %p74 = scmp.eq.s32.totalorder %s27, 0
      %p75 = por %p73, %p74
      %s77 = sadd.s32 %s76, 1
      %p80 = scmp.eq.s32.totalorder %s21, 1
      %p81 = scmp.ne.s32.totalorder %s76, %s78
      %p82 = scmp.eq.s32.totalorder %s21, 0
      %p83 = por %p81, %p82
      %p84 = scmp.ne.s32.totalorder %s76, %s78
      %p85 = scmp.eq.s32.totalorder %s26, 1
      %p86 = por %p84, %p85
      %p87 = scmp.ne.s32.totalorder %s78, %s79
      %p88 = scmp.eq.s32.totalorder %s26, 0
      %p89 = por %p87, %p88
      %p90 = scmp.ne.s32.totalorder %s78, %s79
      %p91 = scmp.eq.s32.totalorder %s27, 1
      %p92 = por %p90, %p91
      %p94 = scmp.ne.s32.totalorder %s79, %s93
      %p95 = scmp.eq.s32.totalorder %s27, 0
      %p96 = por %p94, %p95
      %s98 = sadd.s32 %s97, 1
      %p101 = scmp.eq.s32.totalorder %s21, 1
      %p102 = scmp.ne.s32.totalorder %s97, %s99
      %p103 = scmp.eq.s32.totalorder %s21, 0
      %p104 = por %p102, %p103
      %p105 = scmp.ne.s32.totalorder %s97, %s99
      %p106 = scmp.eq.s32.totalorder %s26, 1
      %p107 = por %p105, %p106
      %p108 = scmp.ne.s32.totalorder %s99, %s100
      %p109 = scmp.eq.s32.totalorder %s26, 0
      %p110 = por %p108, %p109
      %p111 = scmp.ne.s32.totalorder %s99, %s100
      %p112 = scmp.eq.s32.totalorder %s27, 1
      %p113 = por %p111, %p112
      %p115 = scmp.ne.s32.totalorder %s100, %s114
      %p116 = scmp.eq.s32.totalorder %s27, 0
      %p117 = por %p115, %p116
      %s119 = sadd.s32 %s118, 1
      %p122 = scmp.eq.s32.totalorder %s21, 1
      %p123 = scmp.ne.s32.totalorder %s118, %s120
      %p124 = scmp.eq.s32.totalorder %s21, 0
      %p125 = por %p123, %p124
      %p126 = scmp.ne.s32.totalorder %s118, %s120
      %p127 = scmp.eq.s32.totalorder %s26, 1
      %p128 = por %p126, %p127
      %p129 = scmp.ne.s32.totalorder %s120, %s121
      %p130 = scmp.eq.s32.totalorder %s26, 0
      %p131 = por %p129, %p130
      %p132 = scmp.ne.s32.totalorder %s120, %s121
      %p133 = scmp.eq.s32.totalorder %s27, 1
      %p134 = por %p132, %p133
      %p136 = scmp.ne.s32.totalorder %s121, %s135
      %p137 = scmp.eq.s32.totalorder %s27, 0
      %p138 = por %p136, %p137
      %s140 = sadd.s32 %s139, 1
      %p143 = scmp.eq.s32.totalorder %s21, 1
      %p144 = scmp.ne.s32.totalorder %s139, %s141
      %p145 = scmp.eq.s32.totalorder %s21, 0
      %p146 = por %p144, %p145
      %p147 = scmp.ne.s32.totalorder %s139, %s141
      %p148 = scmp.eq.s32.totalorder %s26, 1
      %p149 = por %p147, %p148
      %p150 = scmp.ne.s32.totalorder %s141, %s142
      %p151 = scmp.eq.s32.totalorder %s26, 0
      %p152 = por %p150, %p151
      %p153 = scmp.ne.s32.totalorder %s141, %s142
      %p154 = scmp.eq.s32.totalorder %s27, 1
      %p155 = por %p153, %p154
      %p157 = scmp.ne.s32.totalorder %s142, %s156
      %p158 = scmp.eq.s32.totalorder %s27, 0
      %p159 = por %p157, %p158
      %s161 = sadd.s32 %s160, 1
      %p164 = scmp.eq.s32.totalorder %s21, 1
      %p165 = scmp.ne.s32.totalorder %s160, %s162
      %p166 = scmp.eq.s32.totalorder %s21, 0
      %p167 = por %p165, %p166
      %p168 = scmp.ne.s32.totalorder %s160, %s162
      %p169 = scmp.eq.s32.totalorder %s26, 1
      %p170 = por %p168, %p169
      %p171 = scmp.ne.s32.totalorder %s162, %s163
      %p172 = scmp.eq.s32.totalorder %s26, 0
      %p173 = por %p171, %p172
      %p174 = scmp.ne.s32.totalorder %s162, %s163
      %p175 = scmp.eq.s32.totalorder %s27, 1
      %p176 = por %p174, %p175
      %p178 = scmp.ne.s32.totalorder %s163, %s177
      %p179 = scmp.eq.s32.totalorder %s27, 0
      %p180 = por %p178, %p179
      %s182 = sadd.s32 %s181, 1
      %p185 = scmp.eq.s32.totalorder %s21, 1
      %p186 = scmp.ne.s32.totalorder %s181, %s183
      %p187 = scmp.eq.s32.totalorder %s21, 0
      %p188 = por %p186, %p187
      %p189 = scmp.ne.s32.totalorder %s181, %s183
      %p190 = scmp.eq.s32.totalorder %s26, 1
      %p191 = por %p189, %p190
      %p192 = scmp.ne.s32.totalorder %s183, %s184
      %p193 = scmp.eq.s32.totalorder %s26, 0
      %p194 = por %p192, %p193
      %p195 = scmp.ne.s32.totalorder %s183, %s184
      %p196 = scmp.eq.s32.totalorder %s27, 1
      %p197 = por %p195, %p196
      %p199 = scmp.ne.s32.totalorder %s184, %s198
      %p200 = scmp.eq.s32.totalorder %s27, 0
      %p201 = por %p199, %p200
      %s203 = sadd.s32 %s202, 1
      %p206 = scmp.eq.s32.totalorder %s21, 1
      %p207 = scmp.ne.s32.totalorder %s202, %s204
      %p208 = scmp.eq.s32.totalorder %s21, 0
      %p209 = por %p207, %p208
      %p210 = scmp.ne.s32.totalorder %s202, %s204
      %p211 = scmp.eq.s32.totalorder %s26, 1
      %p212 = por %p210, %p211
      %p213 = scmp.ne.s32.totalorder %s204, %s205
      %p214 = scmp.eq.s32.totalorder %s26, 0
      %p215 = por %p213, %p214
      %p216 = scmp.ne.s32.totalorder %s204, %s205
      %p217 = scmp.eq.s32.totalorder %s27, 1
      %p218 = por %p216, %p217
      %p220 = scmp.ne.s32.totalorder %s205, %s219
      %p221 = scmp.eq.s32.totalorder %s27, 0
      %p222 = por %p220, %p221
      %s223 = ssub.s32 %s21, %s28
      %p224 = scmp.eq.s32.totalorder %s223, 0
      %s226 = sadd.s32 %s225, 1
      %s227 = scalar_select %p224, %s225, %s226
      %p230 = pneg %p224
      %p231 = scmp.eq.s32.totalorder %s21, 1
      %p232 = por %p230, %p231
      %p233 = scmp.ne.s32.totalorder %s225, %s228
      %p234 = scmp.eq.s32.totalorder %s21, 0
      %p235 = por %p233, %p234
      %p236 = scmp.ne.s32.totalorder %s225, %s228
      %p237 = scmp.eq.s32.totalorder %s26, 1
      %p238 = por %p236, %p237
      %p239 = scmp.ne.s32.totalorder %s228, %s229
      %p240 = scmp.eq.s32.totalorder %s26, 0
      %p241 = por %p239, %p240
      %p242 = scmp.ne.s32.totalorder %s228, %s229
      %p243 = scmp.eq.s32.totalorder %s27, 1
      %p244 = por %p242, %p243
      %p246 = scmp.ne.s32.totalorder %s229, %s245
      %p247 = scmp.eq.s32.totalorder %s27, 0
      %p248 = por %p246, %p247
      %p249 = scmp.le.s32.totalorder 1, %s21
      %p250 = scmp.lt.s32.totalorder %s21, 3
      %p251 = pnand %p249, %p250
      %p252 = pneg %p251
      // Predicated region
      $region9: #{tpu_custom_call.1} parent=5 // pred_check
        _
      $region10: #{tpu_custom_call.1} parent=5 // pred_check_branch
        %254 = sbr.rel (%p251) target = $region12
      $region11: #{tpu_custom_call.1} parent=5 // pred_region
        %s255 = ssub.s32 %s21, 1
        // Predicated region
        $region13: #{tpu_custom_call.1} parent=11 // pred_check
          %p256 = pneg %p68
        $region14: #{tpu_custom_call.1} parent=11 // pred_check_branch
          %258 = sbr.rel (%p256) target = $region16
        $region15: #{tpu_custom_call.1} parent=11 // pred_region
          _
        $region16: #{tpu_custom_call.1} parent=11 // pred_fallthru
          _
        // Predicated region
        $region17: #{tpu_custom_call.1} parent=11 // pred_check
          %p259 = pneg %p89
        $region18: #{tpu_custom_call.1} parent=11 // pred_check_branch
          %261 = sbr.rel (%p259) target = $region20
        $region19: #{tpu_custom_call.1} parent=11 // pred_region
          _
        $region20: #{tpu_custom_call.1} parent=11 // pred_fallthru
          _
        // Predicated region
        $region21: #{tpu_custom_call.1} parent=11 // pred_check
          %p262 = pneg %p110
        $region22: #{tpu_custom_call.1} parent=11 // pred_check_branch
          %264 = sbr.rel (%p262) target = $region24
        $region23: #{tpu_custom_call.1} parent=11 // pred_region
          _
        $region24: #{tpu_custom_call.1} parent=11 // pred_fallthru
          _
        // Predicated region
        $region25: #{tpu_custom_call.1} parent=11 // pred_check
          %p265 = pneg %p131
        $region26: #{tpu_custom_call.1} parent=11 // pred_check_branch
          %267 = sbr.rel (%p265) target = $region28
        $region27: #{tpu_custom_call.1} parent=11 // pred_region
          _
        $region28: #{tpu_custom_call.1} parent=11 // pred_fallthru
          _
        // Predicated region
        $region29: #{tpu_custom_call.1} parent=11 // pred_check
          %p268 = pneg %p152
        $region30: #{tpu_custom_call.1} parent=11 // pred_check_branch
          %270 = sbr.rel (%p268) target = $region32
        $region31: #{tpu_custom_call.1} parent=11 // pred_region
          _
        $region32: #{tpu_custom_call.1} parent=11 // pred_fallthru
          _
        // Predicated region
        $region33: #{tpu_custom_call.1} parent=11 // pred_check
          %p271 = pneg %p173
        $region34: #{tpu_custom_call.1} parent=11 // pred_check_branch
          %273 = sbr.rel (%p271) target = $region36
        $region35: #{tpu_custom_call.1} parent=11 // pred_region
          _
        $region36: #{tpu_custom_call.1} parent=11 // pred_fallthru
          _
        // Predicated region
        $region37: #{tpu_custom_call.1} parent=11 // pred_check
          %p274 = pneg %p194
        $region38: #{tpu_custom_call.1} parent=11 // pred_check_branch
          %276 = sbr.rel (%p274) target = $region40
        $region39: #{tpu_custom_call.1} parent=11 // pred_region
          _
        $region40: #{tpu_custom_call.1} parent=11 // pred_fallthru
          _
        // Predicated region
        $region41: #{tpu_custom_call.1} parent=11 // pred_check
          %p277 = pneg %p215
        $region42: #{tpu_custom_call.1} parent=11 // pred_check_branch
          %279 = sbr.rel (%p277) target = $region44
        $region43: #{tpu_custom_call.1} parent=11 // pred_region
          _
        $region44: #{tpu_custom_call.1} parent=11 // pred_fallthru
          _
      $region12: #{tpu_custom_call.1} parent=5 // pred_fallthru
        _
      %p280 = scmp.lt.s32.totalorder %s21, 2
      // Predicated region
      $region45: #{tpu_custom_call.1} parent=5 // pred_check
        %p281 = pneg %p280
      $region46: #{tpu_custom_call.1} parent=5 // pred_check_branch
        %283 = sbr.rel (%p281) target = $region48
      $region47: #{tpu_custom_call.1} parent=5 // pred_region
        // Predicated region
        $region49: #{tpu_custom_call.1} parent=47 // pred_check
          %p284 = pneg %p41
        $region50: #{tpu_custom_call.1} parent=47 // pred_check_branch
          %286 = sbr.rel (%p284) target = $region52
        $region51: #{tpu_custom_call.1} parent=47 // pred_region
          %s287 = sand.u32 %s31, 1
          %s288 = scalar_lea.sflag [#allocation5], %s287
          %s289 = sand.u32 %s31, 1
          %s290 = smul.addr %s289, 64
          %s291 = scalar_lea.vmem [#allocation4], %s290
          %293 = vsyncadd %s288, 0
          %s294 = smul.addr %s21, 16
          %s295 = smul.addr %s294, 8
          %s296 = scalar_lea.hbm %s0, %s295
          %s297 = sshll.u32 %s296, 4
          %s298 = int_to_ptr.hbm [resolvable:$true] %s297
          %s299 = sshll.u32 %s291, 4
          %s300 = int_to_ptr.vmem [resolvable:$true] %s299
          %305 = dma.hbm_to_vmem [thread:$0]  %s298, 1024, %s300, %s288, 256, 128, 8
        $region52: #{tpu_custom_call.1} parent=47 // pred_fallthru
          _
      $region48: #{tpu_custom_call.1} parent=5 // pred_fallthru
        _
      %p306 = scmp.le.s32.totalorder 1, %s21
      %p307 = scmp.lt.s32.totalorder %s21, 3
      %p308 = pnand %p306, %p307
      %p309 = pneg %p308
      // Predicated region
      $region53: #{tpu_custom_call.1} parent=5 // pred_check
        _
      $region54: #{tpu_custom_call.1} parent=5 // pred_check_branch
        %311 = sbr.rel (%p308) target = $region56
      $region55: #{tpu_custom_call.1} parent=5 // pred_region
        %s312 = ssub.s32 %s21, 1
        %s313 = sand.u32 %s34, 1
        %s314 = scalar_lea.sflag [#allocation5], %s313
        %s315 = sand.u32 %s34, 1
        %s316 = smul.addr %s315, 64
        %s317 = scalar_lea.vmem [#allocation4], %s316
        // Predicated region
        $region57: #{tpu_custom_call.1} parent=55 // pred_check
          %p318 = pneg %p47
        $region58: #{tpu_custom_call.1} parent=55 // pred_check_branch
          %320 = sbr.rel (%p318) target = $region60
        $region59: #{tpu_custom_call.1} parent=55 // pred_region
          %322 = dma.done %s314, 1024
        $region60: #{tpu_custom_call.1} parent=55 // pred_fallthru
          _
        %s323 = sand.u32 %s34, 1
        %s324 = scalar_lea.sflag [#allocation5], %s323
        %s325 = sand.u32 %s34, 1
        %s326 = smul.addr %s325, 64
        %s327 = scalar_lea.vmem [#allocation4], %s326
        %p328 = pneg %p47
        %p329 = pneg %p44
        %p330 = pneg %p68
        %p331 = pneg %p65
        %p332 = pneg %p89
        %p333 = pneg %p86
        %p334 = pneg %p110
        %p335 = pneg %p107
        %p336 = pneg %p131
        %p337 = pneg %p128
        %p338 = pneg %p152
        %p339 = pneg %p149
        %p340 = pneg %p173
        %p341 = pneg %p170
        %p342 = pneg %p194
        %p343 = pneg %p191
        %p344 = pneg %p215
        %p345 = pneg %p212
        %p346 = pneg %p241
        %p347 = pneg %p238
        %s348 = sand.u32 %s228, 1
        %s349 = scalar_lea.sflag [#allocation6], %s348
        %s350 = sand.u32 %s228, 1
        %s351 = smul.addr %s350, 64
        %s352 = scalar_lea.vmem [#allocation7], %s351
        %v353 = vld [vmem:[%s317] sm:$0xff]
        %v354 = vld [vmem:[%s317 + $0x8] sm:$0xff]
        %v355 = vld [vmem:[%s317 + $0x10] sm:$0xff]
        %v356 = vld [vmem:[%s317 + $0x18] sm:$0xff]
        %v357 = vld [vmem:[%s317 + $0x20] sm:$0xff]
        %v358 = vld [vmem:[%s317 + $0x28] sm:$0xff]
        %v359 = vld [vmem:[%s317 + $0x30] sm:$0xff]
        %v360 = vld [vmem:[%s317 + $0x38] sm:$0xff]
        %v361 = vld [vmem:[%s1] sm:$0xff]
        %v362 = vld [vmem:[%s2] sm:$0x1]
        %v364 = vperm.slane %v362, 0
        %vm366 = vcmask 64512
        %v368 = vsel %vm366, %v353, 0
        %v371 = vsel %vm366, %v354, 0
        %v374 = vsel %vm366, %v355, 0
        %v377 = vsel %vm366, %v356, 0
        %v380 = vsel %vm366, %v357, 0
        %v383 = vsel %vm366, %v358, 0
        %v386 = vsel %vm366, %v359, 0
        %v389 = vsel %vm366, %v360, 0
        %391 = vmatpush.msra.mxu0 0.0
        %392 = vmatpush.msra.mxu0 0.0
        %393 = vmatpush.msra.mxu0 0.0
        %394 = vmatpush.msra.mxu0 0.0
        %395 = vmatpush.msra.mxu0 0.0
        %396 = vmatpush.msra.mxu0 0.0
        %397 = vmatpush.msra.mxu0 0.0
        %398 = vmatpush.msra.mxu0 0.0
        %399 = vmatpush.msra.mxu0 0.0
        %400 = vmatpush.msra.mxu0 0.0
        %401 = vmatpush.msra.mxu0 0.0
        %402 = vmatpush.msra.mxu0 0.0
        %403 = vmatpush.msra.mxu0 0.0
        %404 = vmatpush.msra.mxu0 0.0
        %405 = vmatpush.msra.mxu0 0.0
        %406 = vmatpush.msra.mxu0 %v361
        %407 = vmatmul.f32.gmra.mxu0 %v368
        %v408 = vpop.f32.mrf.mxu0
        %v409 = vadd.f32 %v364, %v408
        %410 = vmatmul.f32.gmra.mxu0 %v371
        %v411 = vpop.f32.mrf.mxu0
        %v412 = vadd.f32 %v364, %v411
        %413 = vmatmul.f32.gmra.mxu0 %v374
        %v414 = vpop.f32.mrf.mxu0
        %v415 = vadd.f32 %v364, %v414
        %416 = vmatmul.f32.gmra.mxu0 %v377
        %v417 = vpop.f32.mrf.mxu0
        %v418 = vadd.f32 %v364, %v417
        %419 = vmatmul.f32.gmra.mxu0 %v380
        %v420 = vpop.f32.mrf.mxu0
        %v421 = vadd.f32 %v364, %v420
        %422 = vmatmul.f32.gmra.mxu0 %v383
        %v423 = vpop.f32.mrf.mxu0
        %v424 = vadd.f32 %v364, %v423
        %425 = vmatmul.f32.gmra.mxu0 %v386
        %v426 = vpop.f32.mrf.mxu0
        %v427 = vadd.f32 %v364, %v426
        %428 = vmatmul.f32.gmra.mxu0 %v389
        %v429 = vpop.f32.mrf.mxu0
        %v430 = vadd.f32 %v364, %v429
        %431 = vdwg.mxu0
        %v432 = vmax.f32 %v409, 0.0
        %v433 = vmax.f32 %v412, 0.0
        %v434 = vmax.f32 %v415, 0.0
        %v435 = vmax.f32 %v418, 0.0
        %v436 = vmax.f32 %v421, 0.0
        %v437 = vmax.f32 %v424, 0.0
        %v438 = vmax.f32 %v427, 0.0
        %v439 = vmax.f32 %v430, 0.0
        %440 = vst.msk [vmem:[#allocation2] sm:$0xff] %vm366, 0.0
        %vm441 = vcmask 58368
        %442 = vst.msk [vmem:[#allocation2 + $0x8] sm:$0x3] %vm441, 0.0
        %443 = vst.msk [vmem:[#allocation2 + $0x10] sm:$0xff] %vm366, 0.0
        %444 = vst.msk [vmem:[#allocation2 + $0x18] sm:$0x3] %vm441, 0.0
        %445 = vst.msk [vmem:[#allocation2 + $0x20] sm:$0xff] %vm366, 0.0
        %446 = vst.msk [vmem:[#allocation2 + $0x28] sm:$0x3] %vm441, 0.0
        %447 = vst.msk [vmem:[#allocation2 + $0x30] sm:$0xff] %vm366, 0.0
        %448 = vst.msk [vmem:[#allocation2 + $0x38] sm:$0x3] %vm441, 0.0
        %449 = vst.msk [vmem:[#allocation2 + $0x40] sm:$0xff] %vm366, 0.0
        %450 = vst.msk [vmem:[#allocation2 + $0x48] sm:$0x3] %vm441, 0.0
        %451 = vst.msk [vmem:[#allocation2 + $0x50] sm:$0xff] %vm366, 0.0
        %452 = vst.msk [vmem:[#allocation2 + $0x58] sm:$0x3] %vm441, 0.0
        %453 = vst.msk [vmem:[#allocation2 + $0x60] sm:$0xff] %vm366, 0.0
        %454 = vst.msk [vmem:[#allocation2 + $0x68] sm:$0x3] %vm441, 0.0
        %455 = vst.msk [vmem:[#allocation2 + $0x70] sm:$0xff] %vm366, 0.0
        %456 = vst.msk [vmem:[#allocation2 + $0x78] sm:$0x3] %vm441, 0.0
        %457 = vst.msk [vmem:[#allocation2 + $0x80] sm:$0xff] %vm366, 0.0
        %458 = vst.msk [vmem:[#allocation2 + $0x88] sm:$0x3] %vm441, 0.0
        %459 = vst.msk [vmem:[#allocation2 + $0x90] sm:$0xff] %vm366, 0.0
        %460 = vst.msk [vmem:[#allocation2 + $0x98] sm:$0x3] %vm441, 0.0
        %s461 = scalar_lea.vmem [#allocation2], 16
        %462 = vst.msk [vmem:[%s461 + $0x1] sm:$0xff] %vm366, %v432
        %463 = vst.msk [vmem:[%s461 + $0x11] sm:$0xff] %vm366, %v433
        %464 = vst.msk [vmem:[%s461 + $0x21] sm:$0xff] %vm366, %v434
        %465 = vst.msk [vmem:[%s461 + $0x31] sm:$0xff] %vm366, %v435
        %466 = vst.msk [vmem:[%s461 + $0x41] sm:$0xff] %vm366, %v436
        %467 = vst.msk [vmem:[%s461 + $0x51] sm:$0xff] %vm366, %v437
        %468 = vst.msk [vmem:[%s461 + $0x61] sm:$0xff] %vm366, %v438
        %469 = vst.msk [vmem:[%s461 + $0x71] sm:$0xff] %vm366, %v439
        %470 = vst.msk [vmem:[#allocation3] sm:$0xff] %vm366, 0.0
        %471 = vst.msk [vmem:[#allocation3 + $0x8] sm:$0xff] %vm366, 0.0
        %472 = vst.msk [vmem:[#allocation3 + $0x10] sm:$0xff] %vm366, 0.0
        %473 = vst.msk [vmem:[#allocation3 + $0x18] sm:$0xff] %vm366, 0.0
        %474 = vst.msk [vmem:[#allocation3 + $0x20] sm:$0xff] %vm366, 0.0
        %475 = vst.msk [vmem:[#allocation3 + $0x28] sm:$0xff] %vm366, 0.0
        %476 = vst.msk [vmem:[#allocation3 + $0x30] sm:$0xff] %vm366, 0.0
        %477 = vst.msk [vmem:[#allocation3 + $0x38] sm:$0xff] %vm366, 0.0
        %v478 = vld [vmem:[#allocation2] sm:$0xff]
        %v479 = vld [vmem:[#allocation2 + $0x10] sm:$0xff]
        %v480 = vld [vmem:[#allocation2 + $0x20] sm:$0xff]
        %v481 = vld [vmem:[#allocation2 + $0x30] sm:$0xff]
        %v482 = vld [vmem:[#allocation2 + $0x40] sm:$0xff]
        %v483 = vld [vmem:[#allocation2 + $0x50] sm:$0xff]
        %v484 = vld [vmem:[#allocation2 + $0x60] sm:$0xff]
        %v485 = vld [vmem:[#allocation2 + $0x70] sm:$0xff]
        %v486 = vld [vmem:[#allocation3] sm:$0xff]
        %v487 = vld [vmem:[#allocation3 + $0x8] sm:$0xff]
        %v488 = vld [vmem:[#allocation3 + $0x10] sm:$0xff]
        %v489 = vld [vmem:[#allocation3 + $0x18] sm:$0xff]
        %v490 = vld [vmem:[#allocation3 + $0x20] sm:$0xff]
        %v491 = vld [vmem:[#allocation3 + $0x28] sm:$0xff]
        %v492 = vld [vmem:[#allocation3 + $0x30] sm:$0xff]
        %v493 = vld [vmem:[#allocation3 + $0x38] sm:$0xff]
        %v494 = vld [vmem:[%s3] sm:$0xff]
        %v496 = vsel %vm366, %v478, 0
        %v499 = vsel %vm366, %v479, 0
        %v502 = vsel %vm366, %v480, 0
        %v505 = vsel %vm366, %v481, 0
        %v508 = vsel %vm366, %v482, 0
        %v511 = vsel %vm366, %v483, 0
        %v514 = vsel %vm366, %v484, 0
        %v517 = vsel %vm366, %v485, 0
        %519 = vmatpush.msra.mxu0 0.0
        %520 = vmatpush.msra.mxu0 0.0
        %521 = vmatpush.msra.mxu0 0.0
        %522 = vmatpush.msra.mxu0 0.0
        %523 = vmatpush.msra.mxu0 0.0
        %524 = vmatpush.msra.mxu0 0.0
        %525 = vmatpush.msra.mxu0 0.0
        %526 = vmatpush.msra.mxu0 0.0
        %527 = vmatpush.msra.mxu0 0.0
        %528 = vmatpush.msra.mxu0 0.0
        %529 = vmatpush.msra.mxu0 0.0
        %530 = vmatpush.msra.mxu0 0.0
        %531 = vmatpush.msra.mxu0 0.0
        %532 = vmatpush.msra.mxu0 0.0
        %533 = vmatpush.msra.mxu0 0.0
        %534 = vmatpush.msra.mxu0 %v494
        %535 = vmatmul.f32.gmra.mxu0 %v496
        %v536 = vpop.f32.mrf.mxu0
        %v537 = vadd.f32 0.0, %v536
        %538 = vmatmul.f32.gmra.mxu0 %v499
        %v539 = vpop.f32.mrf.mxu0
        %v540 = vadd.f32 0.0, %v539
        %541 = vmatmul.f32.gmra.mxu0 %v502
        %v542 = vpop.f32.mrf.mxu0
        %v543 = vadd.f32 0.0, %v542
        %544 = vmatmul.f32.gmra.mxu0 %v505
        %v545 = vpop.f32.mrf.mxu0
        %v546 = vadd.f32 0.0, %v545
        %547 = vmatmul.f32.gmra.mxu0 %v508
        %v548 = vpop.f32.mrf.mxu0
        %v549 = vadd.f32 0.0, %v548
        %550 = vmatmul.f32.gmra.mxu0 %v511
        %v551 = vpop.f32.mrf.mxu0
        %v552 = vadd.f32 0.0, %v551
        %553 = vmatmul.f32.gmra.mxu0 %v514
        %v554 = vpop.f32.mrf.mxu0
        %v555 = vadd.f32 0.0, %v554
        %556 = vmatmul.f32.gmra.mxu0 %v517
        %v557 = vpop.f32.mrf.mxu0
        %v558 = vadd.f32 0.0, %v557
        %559 = vdwg.mxu0
        %v560 = vadd.f32 %v486, %v537
        %v561 = vadd.f32 %v487, %v540
        %v562 = vadd.f32 %v488, %v543
        %v563 = vadd.f32 %v489, %v546
        %v564 = vadd.f32 %v490, %v549
        %v565 = vadd.f32 %v491, %v552
        %v566 = vadd.f32 %v492, %v555
        %v567 = vadd.f32 %v493, %v558
        %568 = vst.msk [vmem:[#allocation3] sm:$0xff] %vm366, %v560
        %569 = vst.msk [vmem:[#allocation3 + $0x8] sm:$0xff] %vm366, %v561
        %570 = vst.msk [vmem:[#allocation3 + $0x10] sm:$0xff] %vm366, %v562
        %571 = vst.msk [vmem:[#allocation3 + $0x18] sm:$0xff] %vm366, %v563
        %572 = vst.msk [vmem:[#allocation3 + $0x20] sm:$0xff] %vm366, %v564
        %573 = vst.msk [vmem:[#allocation3 + $0x28] sm:$0xff] %vm366, %v565
        %574 = vst.msk [vmem:[#allocation3 + $0x30] sm:$0xff] %vm366, %v566
        %575 = vst.msk [vmem:[#allocation3 + $0x38] sm:$0xff] %vm366, %v567
        %v576 = vld [vmem:[#allocation2 + $0x1] sm:$0xff]
        %v577 = vld [vmem:[#allocation2 + $0x11] sm:$0xff]
        %v578 = vld [vmem:[#allocation2 + $0x21] sm:$0xff]
        %v579 = vld [vmem:[#allocation2 + $0x31] sm:$0xff]
        %v580 = vld [vmem:[#allocation2 + $0x41] sm:$0xff]
        %v581 = vld [vmem:[#allocation2 + $0x51] sm:$0xff]
        %v582 = vld [vmem:[#allocation2 + $0x61] sm:$0xff]
        %v583 = vld [vmem:[#allocation2 + $0x71] sm:$0xff]
        %v584 = vld [vmem:[#allocation3] sm:$0xff]
        %v585 = vld [vmem:[#allocation3 + $0x8] sm:$0xff]
        %v586 = vld [vmem:[#allocation3 + $0x10] sm:$0xff]
        %v587 = vld [vmem:[#allocation3 + $0x18] sm:$0xff]
        %v588 = vld [vmem:[#allocation3 + $0x20] sm:$0xff]
        %v589 = vld [vmem:[#allocation3 + $0x28] sm:$0xff]
        %v590 = vld [vmem:[#allocation3 + $0x30] sm:$0xff]
        %v591 = vld [vmem:[#allocation3 + $0x38] sm:$0xff]
        %s592 = scalar_lea.vmem %s3, 8
        %v593 = vld [vmem:[%s592] sm:$0xff]
        %v595 = vsel %vm366, %v576, 0
        %v598 = vsel %vm366, %v577, 0
        %v601 = vsel %vm366, %v578, 0
        %v604 = vsel %vm366, %v579, 0
        %v607 = vsel %vm366, %v580, 0
        %v610 = vsel %vm366, %v581, 0
        %v613 = vsel %vm366, %v582, 0
        %v616 = vsel %vm366, %v583, 0
        %618 = vmatpush.msra.mxu0 0.0
        %619 = vmatpush.msra.mxu0 0.0
        %620 = vmatpush.msra.mxu0 0.0
        %621 = vmatpush.msra.mxu0 0.0
        %622 = vmatpush.msra.mxu0 0.0
        %623 = vmatpush.msra.mxu0 0.0
        %624 = vmatpush.msra.mxu0 0.0
        %625 = vmatpush.msra.mxu0 0.0
        %626 = vmatpush.msra.mxu0 0.0
        %627 = vmatpush.msra.mxu0 0.0
        %628 = vmatpush.msra.mxu0 0.0
        %629 = vmatpush.msra.mxu0 0.0
        %630 = vmatpush.msra.mxu0 0.0
        %631 = vmatpush.msra.mxu0 0.0
        %632 = vmatpush.msra.mxu0 0.0
        %633 = vmatpush.msra.mxu0 %v593
        %634 = vmatmul.f32.gmra.mxu0 %v595
        %v635 = vpop.f32.mrf.mxu0
        %v636 = vadd.f32 0.0, %v635
        %637 = vmatmul.f32.gmra.mxu0 %v598
        %v638 = vpop.f32.mrf.mxu0
        %v639 = vadd.f32 0.0, %v638
        %640 = vmatmul.f32.gmra.mxu0 %v601
        %v641 = vpop.f32.mrf.mxu0
        %v642 = vadd.f32 0.0, %v641
        %643 = vmatmul.f32.gmra.mxu0 %v604
        %v644 = vpop.f32.mrf.mxu0
        %v645 = vadd.f32 0.0, %v644
        %646 = vmatmul.f32.gmra.mxu0 %v607
        %v647 = vpop.f32.mrf.mxu0
        %v648 = vadd.f32 0.0, %v647
        %649 = vmatmul.f32.gmra.mxu0 %v610
        %v650 = vpop.f32.mrf.mxu0
        %v651 = vadd.f32 0.0, %v650
        %652 = vmatmul.f32.gmra.mxu0 %v613
        %v653 = vpop.f32.mrf.mxu0
        %v654 = vadd.f32 0.0, %v653
        %655 = vmatmul.f32.gmra.mxu0 %v616
        %v656 = vpop.f32.mrf.mxu0
        %v657 = vadd.f32 0.0, %v656
        %658 = vdwg.mxu0
        %v659 = vadd.f32 %v584, %v636
        %v660 = vadd.f32 %v585, %v639
        %v661 = vadd.f32 %v586, %v642
        %v662 = vadd.f32 %v587, %v645
        %v663 = vadd.f32 %v588, %v648
        %v664 = vadd.f32 %v589, %v651
        %v665 = vadd.f32 %v590, %v654
        %v666 = vadd.f32 %v591, %v657
        %667 = vst.msk [vmem:[#allocation3] sm:$0xff] %vm366, %v659
        %668 = vst.msk [vmem:[#allocation3 + $0x8] sm:$0xff] %vm366, %v660
        %669 = vst.msk [vmem:[#allocation3 + $0x10] sm:$0xff] %vm366, %v661
        %670 = vst.msk [vmem:[#allocation3 + $0x18] sm:$0xff] %vm366, %v662
        %671 = vst.msk [vmem:[#allocation3 + $0x20] sm:$0xff] %vm366, %v663
        %672 = vst.msk [vmem:[#allocation3 + $0x28] sm:$0xff] %vm366, %v664
        %673 = vst.msk [vmem:[#allocation3 + $0x30] sm:$0xff] %vm366, %v665
        %674 = vst.msk [vmem:[#allocation3 + $0x38] sm:$0xff] %vm366, %v666
        %v675 = vld [vmem:[#allocation2 + $0x2] sm:$0xff]
        %v676 = vld [vmem:[#allocation2 + $0x12] sm:$0xff]
        %v677 = vld [vmem:[#allocation2 + $0x22] sm:$0xff]
        %v678 = vld [vmem:[#allocation2 + $0x32] sm:$0xff]
        %v679 = vld [vmem:[#allocation2 + $0x42] sm:$0xff]
        %v680 = vld [vmem:[#allocation2 + $0x52] sm:$0xff]
        %v681 = vld [vmem:[#allocation2 + $0x62] sm:$0xff]
        %v682 = vld [vmem:[#allocation2 + $0x72] sm:$0xff]
        %v683 = vld [vmem:[#allocation3] sm:$0xff]
        %v684 = vld [vmem:[#allocation3 + $0x8] sm:$0xff]
        %v685 = vld [vmem:[#allocation3 + $0x10] sm:$0xff]
        %v686 = vld [vmem:[#allocation3 + $0x18] sm:$0xff]
        %v687 = vld [vmem:[#allocation3 + $0x20] sm:$0xff]
        %v688 = vld [vmem:[#allocation3 + $0x28] sm:$0xff]
        %v689 = vld [vmem:[#allocation3 + $0x30] sm:$0xff]
        %v690 = vld [vmem:[#allocation3 + $0x38] sm:$0xff]
        %s691 = scalar_lea.vmem %s3, 16
        %v692 = vld [vmem:[%s691] sm:$0xff]
        %v694 = vsel %vm366, %v675, 0
        %v697 = vsel %vm366, %v676, 0
        %v700 = vsel %vm366, %v677, 0
        %v703 = vsel %vm366, %v678, 0
        %v706 = vsel %vm366, %v679, 0
        %v709 = vsel %vm366, %v680, 0
        %v712 = vsel %vm366, %v681, 0
        %v715 = vsel %vm366, %v682, 0
        %717 = vmatpush.msra.mxu0 0.0
        %718 = vmatpush.msra.mxu0 0.0
        %719 = vmatpush.msra.mxu0 0.0
        %720 = vmatpush.msra.mxu0 0.0
        %721 = vmatpush.msra.mxu0 0.0
        %722 = vmatpush.msra.mxu0 0.0
        %723 = vmatpush.msra.mxu0 0.0
        %724 = vmatpush.msra.mxu0 0.0
        %725 = vmatpush.msra.mxu0 0.0
        %726 = vmatpush.msra.mxu0 0.0
        %727 = vmatpush.msra.mxu0 0.0
        %728 = vmatpush.msra.mxu0 0.0
        %729 = vmatpush.msra.mxu0 0.0
        %730 = vmatpush.msra.mxu0 0.0
        %731 = vmatpush.msra.mxu0 0.0
        %732 = vmatpush.msra.mxu0 %v692
        %733 = vmatmul.f32.gmra.mxu0 %v694
        %v734 = vpop.f32.mrf.mxu0
        %v735 = vadd.f32 0.0, %v734
        %736 = vmatmul.f32.gmra.mxu0 %v697
        %v737 = vpop.f32.mrf.mxu0
        %v738 = vadd.f32 0.0, %v737
        %739 = vmatmul.f32.gmra.mxu0 %v700
        %v740 = vpop.f32.mrf.mxu0
        %v741 = vadd.f32 0.0, %v740
        %742 = vmatmul.f32.gmra.mxu0 %v703
        %v743 = vpop.f32.mrf.mxu0
        %v744 = vadd.f32 0.0, %v743
        %745 = vmatmul.f32.gmra.mxu0 %v706
        %v746 = vpop.f32.mrf.mxu0
        %v747 = vadd.f32 0.0, %v746
        %748 = vmatmul.f32.gmra.mxu0 %v709
        %v749 = vpop.f32.mrf.mxu0
        %v750 = vadd.f32 0.0, %v749
        %751 = vmatmul.f32.gmra.mxu0 %v712
        %v752 = vpop.f32.mrf.mxu0
        %v753 = vadd.f32 0.0, %v752
        %754 = vmatmul.f32.gmra.mxu0 %v715
        %v755 = vpop.f32.mrf.mxu0
        %v756 = vadd.f32 0.0, %v755
        %757 = vdwg.mxu0
        %v758 = vadd.f32 %v683, %v735
        %v759 = vadd.f32 %v684, %v738
        %v760 = vadd.f32 %v685, %v741
        %v761 = vadd.f32 %v686, %v744
        %v762 = vadd.f32 %v687, %v747
        %v763 = vadd.f32 %v688, %v750
        %v764 = vadd.f32 %v689, %v753
        %v765 = vadd.f32 %v690, %v756
        %766 = vst.msk [vmem:[#allocation3] sm:$0xff] %vm366, %v758
        %767 = vst.msk [vmem:[#allocation3 + $0x8] sm:$0xff] %vm366, %v759
        %768 = vst.msk [vmem:[#allocation3 + $0x10] sm:$0xff] %vm366, %v760
        %769 = vst.msk [vmem:[#allocation3 + $0x18] sm:$0xff] %vm366, %v761
        %770 = vst.msk [vmem:[#allocation3 + $0x20] sm:$0xff] %vm366, %v762
        %771 = vst.msk [vmem:[#allocation3 + $0x28] sm:$0xff] %vm366, %v763
        %772 = vst.msk [vmem:[#allocation3 + $0x30] sm:$0xff] %vm366, %v764
        %773 = vst.msk [vmem:[#allocation3 + $0x38] sm:$0xff] %vm366, %v765
        %v774 = vld [vmem:[%s461] sm:$0xff]
        %v775 = vld [vmem:[%s461 + $0x10] sm:$0xff]
        %v776 = vld [vmem:[%s461 + $0x20] sm:$0xff]
        %v777 = vld [vmem:[%s461 + $0x30] sm:$0xff]
        %v778 = vld [vmem:[%s461 + $0x40] sm:$0xff]
        %v779 = vld [vmem:[%s461 + $0x50] sm:$0xff]
        %v780 = vld [vmem:[%s461 + $0x60] sm:$0xff]
        %v781 = vld [vmem:[%s461 + $0x70] sm:$0xff]
        %v782 = vld [vmem:[#allocation3] sm:$0xff]
        %v783 = vld [vmem:[#allocation3 + $0x8] sm:$0xff]
        %v784 = vld [vmem:[#allocation3 + $0x10] sm:$0xff]
        %v785 = vld [vmem:[#allocation3 + $0x18] sm:$0xff]
        %v786 = vld [vmem:[#allocation3 + $0x20] sm:$0xff]
        %v787 = vld [vmem:[#allocation3 + $0x28] sm:$0xff]
        %v788 = vld [vmem:[#allocation3 + $0x30] sm:$0xff]
        %v789 = vld [vmem:[#allocation3 + $0x38] sm:$0xff]
        %s790 = scalar_lea.vmem %s3, 24
        %v791 = vld [vmem:[%s790] sm:$0xff]
        %v793 = vsel %vm366, %v774, 0
        %v796 = vsel %vm366, %v775, 0
        %v799 = vsel %vm366, %v776, 0
        %v802 = vsel %vm366, %v777, 0
        %v805 = vsel %vm366, %v778, 0
        %v808 = vsel %vm366, %v779, 0
        %v811 = vsel %vm366, %v780, 0
        %v814 = vsel %vm366, %v781, 0
        %816 = vmatpush.msra.mxu0 0.0
        %817 = vmatpush.msra.mxu0 0.0
        %818 = vmatpush.msra.mxu0 0.0
        %819 = vmatpush.msra.mxu0 0.0
        %820 = vmatpush.msra.mxu0 0.0
        %821 = vmatpush.msra.mxu0 0.0
        %822 = vmatpush.msra.mxu0 0.0
        %823 = vmatpush.msra.mxu0 0.0
        %824 = vmatpush.msra.mxu0 0.0
        %825 = vmatpush.msra.mxu0 0.0
        %826 = vmatpush.msra.mxu0 0.0
        %827 = vmatpush.msra.mxu0 0.0
        %828 = vmatpush.msra.mxu0 0.0
        %829 = vmatpush.msra.mxu0 0.0
        %830 = vmatpush.msra.mxu0 0.0
        %831 = vmatpush.msra.mxu0 %v791
        %832 = vmatmul.f32.gmra.mxu0 %v793
        %v833 = vpop.f32.mrf.mxu0
        %v834 = vadd.f32 0.0, %v833
        %835 = vmatmul.f32.gmra.mxu0 %v796
        %v836 = vpop.f32.mrf.mxu0
        %v837 = vadd.f32 0.0, %v836
        %838 = vmatmul.f32.gmra.mxu0 %v799
        %v839 = vpop.f32.mrf.mxu0
        %v840 = vadd.f32 0.0, %v839
        %841 = vmatmul.f32.gmra.mxu0 %v802
        %v842 = vpop.f32.mrf.mxu0
        %v843 = vadd.f32 0.0, %v842
        %844 = vmatmul.f32.gmra.mxu0 %v805
        %v845 = vpop.f32.mrf.mxu0
        %v846 = vadd.f32 0.0, %v845
        %847 = vmatmul.f32.gmra.mxu0 %v808
        %v848 = vpop.f32.mrf.mxu0
        %v849 = vadd.f32 0.0, %v848
        %850 = vmatmul.f32.gmra.mxu0 %v811
        %v851 = vpop.f32.mrf.mxu0
        %v852 = vadd.f32 0.0, %v851
        %853 = vmatmul.f32.gmra.mxu0 %v814
        %v854 = vpop.f32.mrf.mxu0
        %v855 = vadd.f32 0.0, %v854
        %856 = vdwg.mxu0
        %v857 = vadd.f32 %v782, %v834
        %v858 = vadd.f32 %v783, %v837
        %v859 = vadd.f32 %v784, %v840
        %v860 = vadd.f32 %v785, %v843
        %v861 = vadd.f32 %v786, %v846
        %v862 = vadd.f32 %v787, %v849
        %v863 = vadd.f32 %v788, %v852
        %v864 = vadd.f32 %v789, %v855
        %865 = vst.msk [vmem:[#allocation3] sm:$0xff] %vm366, %v857
        %866 = vst.msk [vmem:[#allocation3 + $0x8] sm:$0xff] %vm366, %v858
        %867 = vst.msk [vmem:[#allocation3 + $0x10] sm:$0xff] %vm366, %v859
        %868 = vst.msk [vmem:[#allocation3 + $0x18] sm:$0xff] %vm366, %v860
        %869 = vst.msk [vmem:[#allocation3 + $0x20] sm:$0xff] %vm366, %v861
        %870 = vst.msk [vmem:[#allocation3 + $0x28] sm:$0xff] %vm366, %v862
        %871 = vst.msk [vmem:[#allocation3 + $0x30] sm:$0xff] %vm366, %v863
        %872 = vst.msk [vmem:[#allocation3 + $0x38] sm:$0xff] %vm366, %v864
        %v873 = vld [vmem:[%s461 + $0x1] sm:$0xff]
        %v874 = vld [vmem:[%s461 + $0x11] sm:$0xff]
        %v875 = vld [vmem:[%s461 + $0x21] sm:$0xff]
        %v876 = vld [vmem:[%s461 + $0x31] sm:$0xff]
        %v877 = vld [vmem:[%s461 + $0x41] sm:$0xff]
        %v878 = vld [vmem:[%s461 + $0x51] sm:$0xff]
        %v879 = vld [vmem:[%s461 + $0x61] sm:$0xff]
        %v880 = vld [vmem:[%s461 + $0x71] sm:$0xff]
        %v881 = vld [vmem:[#allocation3] sm:$0xff]
        %v882 = vld [vmem:[#allocation3 + $0x8] sm:$0xff]
        %v883 = vld [vmem:[#allocation3 + $0x10] sm:$0xff]
        %v884 = vld [vmem:[#allocation3 + $0x18] sm:$0xff]
        %v885 = vld [vmem:[#allocation3 + $0x20] sm:$0xff]
        %v886 = vld [vmem:[#allocation3 + $0x28] sm:$0xff]
        %v887 = vld [vmem:[#allocation3 + $0x30] sm:$0xff]
        %v888 = vld [vmem:[#allocation3 + $0x38] sm:$0xff]
        %s889 = scalar_lea.vmem %s3, 32
        %v890 = vld [vmem:[%s889] sm:$0xff]
        %v892 = vsel %vm366, %v873, 0
        %v895 = vsel %vm366, %v874, 0
        %v898 = vsel %vm366, %v875, 0
        %v901 = vsel %vm366, %v876, 0
        %v904 = vsel %vm366, %v877, 0
        %v907 = vsel %vm366, %v878, 0
        %v910 = vsel %vm366, %v879, 0
        %v913 = vsel %vm366, %v880, 0
        %915 = vmatpush.msra.mxu0 0.0
        %916 = vmatpush.msra.mxu0 0.0
        %917 = vmatpush.msra.mxu0 0.0
        %918 = vmatpush.msra.mxu0 0.0
        %919 = vmatpush.msra.mxu0 0.0
        %920 = vmatpush.msra.mxu0 0.0
        %921 = vmatpush.msra.mxu0 0.0
        %922 = vmatpush.msra.mxu0 0.0
        %923 = vmatpush.msra.mxu0 0.0
        %924 = vmatpush.msra.mxu0 0.0
        %925 = vmatpush.msra.mxu0 0.0
        %926 = vmatpush.msra.mxu0 0.0
        %927 = vmatpush.msra.mxu0 0.0
        %928 = vmatpush.msra.mxu0 0.0
        %929 = vmatpush.msra.mxu0 0.0
        %930 = vmatpush.msra.mxu0 %v890
        %931 = vmatmul.f32.gmra.mxu0 %v892
        %v932 = vpop.f32.mrf.mxu0
        %v933 = vadd.f32 0.0, %v932
        %934 = vmatmul.f32.gmra.mxu0 %v895
        %v935 = vpop.f32.mrf.mxu0
        %v936 = vadd.f32 0.0, %v935
        %937 = vmatmul.f32.gmra.mxu0 %v898
        %v938 = vpop.f32.mrf.mxu0
        %v939 = vadd.f32 0.0, %v938
        %940 = vmatmul.f32.gmra.mxu0 %v901
        %v941 = vpop.f32.mrf.mxu0
        %v942 = vadd.f32 0.0, %v941
        %943 = vmatmul.f32.gmra.mxu0 %v904
        %v944 = vpop.f32.mrf.mxu0
        %v945 = vadd.f32 0.0, %v944
        %946 = vmatmul.f32.gmra.mxu0 %v907
        %v947 = vpop.f32.mrf.mxu0
        %v948 = vadd.f32 0.0, %v947
        %949 = vmatmul.f32.gmra.mxu0 %v910
        %v950 = vpop.f32.mrf.mxu0
        %v951 = vadd.f32 0.0, %v950
        %952 = vmatmul.f32.gmra.mxu0 %v913
        %v953 = vpop.f32.mrf.mxu0
        %v954 = vadd.f32 0.0, %v953
        %955 = vdwg.mxu0
        %v956 = vadd.f32 %v881, %v933
        %v957 = vadd.f32 %v882, %v936
        %v958 = vadd.f32 %v883, %v939
        %v959 = vadd.f32 %v884, %v942
        %v960 = vadd.f32 %v885, %v945
        %v961 = vadd.f32 %v886, %v948
        %v962 = vadd.f32 %v887, %v951
        %v963 = vadd.f32 %v888, %v954
        %964 = vst.msk [vmem:[#allocation3] sm:$0xff] %vm366, %v956
        %965 = vst.msk [vmem:[#allocation3 + $0x8] sm:$0xff] %vm366, %v957
        %966 = vst.msk [vmem:[#allocation3 + $0x10] sm:$0xff] %vm366, %v958
        %967 = vst.msk [vmem:[#allocation3 + $0x18] sm:$0xff] %vm366, %v959
        %968 = vst.msk [vmem:[#allocation3 + $0x20] sm:$0xff] %vm366, %v960
        %969 = vst.msk [vmem:[#allocation3 + $0x28] sm:$0xff] %vm366, %v961
        %970 = vst.msk [vmem:[#allocation3 + $0x30] sm:$0xff] %vm366, %v962
        %971 = vst.msk [vmem:[#allocation3 + $0x38] sm:$0xff] %vm366, %v963
        %v972 = vld [vmem:[%s461 + $0x2] sm:$0xff]
        %v973 = vld [vmem:[%s461 + $0x12] sm:$0xff]
        %v974 = vld [vmem:[%s461 + $0x22] sm:$0xff]
        %v975 = vld [vmem:[%s461 + $0x32] sm:$0xff]
        %v976 = vld [vmem:[%s461 + $0x42] sm:$0xff]
        %v977 = vld [vmem:[%s461 + $0x52] sm:$0xff]
        %v978 = vld [vmem:[%s461 + $0x62] sm:$0xff]
        %v979 = vld [vmem:[%s461 + $0x72] sm:$0xff]
        %v980 = vld [vmem:[#allocation3] sm:$0xff]
        %v981 = vld [vmem:[#allocation3 + $0x8] sm:$0xff]
        %v982 = vld [vmem:[#allocation3 + $0x10] sm:$0xff]
        %v983 = vld [vmem:[#allocation3 + $0x18] sm:$0xff]
        %v984 = vld [vmem:[#allocation3 + $0x20] sm:$0xff]
        %v985 = vld [vmem:[#allocation3 + $0x28] sm:$0xff]
        %v986 = vld [vmem:[#allocation3 + $0x30] sm:$0xff]
        %v987 = vld [vmem:[#allocation3 + $0x38] sm:$0xff]
        %s988 = scalar_lea.vmem %s3, 40
        %v989 = vld [vmem:[%s988] sm:$0xff]
        %v991 = vsel %vm366, %v972, 0
        %v994 = vsel %vm366, %v973, 0
        %v997 = vsel %vm366, %v974, 0
        %v1000 = vsel %vm366, %v975, 0
        %v1003 = vsel %vm366, %v976, 0
        %v1006 = vsel %vm366, %v977, 0
        %v1009 = vsel %vm366, %v978, 0
        %v1012 = vsel %vm366, %v979, 0
        %1014 = vmatpush.msra.mxu0 0.0
        %1015 = vmatpush.msra.mxu0 0.0
        %1016 = vmatpush.msra.mxu0 0.0
        %1017 = vmatpush.msra.mxu0 0.0
        %1018 = vmatpush.msra.mxu0 0.0
        %1019 = vmatpush.msra.mxu0 0.0
        %1020 = vmatpush.msra.mxu0 0.0
        %1021 = vmatpush.msra.mxu0 0.0
        %1022 = vmatpush.msra.mxu0 0.0
        %1023 = vmatpush.msra.mxu0 0.0
        %1024 = vmatpush.msra.mxu0 0.0
        %1025 = vmatpush.msra.mxu0 0.0
        %1026 = vmatpush.msra.mxu0 0.0
        %1027 = vmatpush.msra.mxu0 0.0
        %1028 = vmatpush.msra.mxu0 0.0
        %1029 = vmatpush.msra.mxu0 %v989
        %1030 = vmatmul.f32.gmra.mxu0 %v991
        %v1031 = vpop.f32.mrf.mxu0
        %v1032 = vadd.f32 0.0, %v1031
        %1033 = vmatmul.f32.gmra.mxu0 %v994
        %v1034 = vpop.f32.mrf.mxu0
        %v1035 = vadd.f32 0.0, %v1034
        %1036 = vmatmul.f32.gmra.mxu0 %v997
        %v1037 = vpop.f32.mrf.mxu0
        %v1038 = vadd.f32 0.0, %v1037
        %1039 = vmatmul.f32.gmra.mxu0 %v1000
        %v1040 = vpop.f32.mrf.mxu0
        %v1041 = vadd.f32 0.0, %v1040
        %1042 = vmatmul.f32.gmra.mxu0 %v1003
        %v1043 = vpop.f32.mrf.mxu0
        %v1044 = vadd.f32 0.0, %v1043
        %1045 = vmatmul.f32.gmra.mxu0 %v1006
        %v1046 = vpop.f32.mrf.mxu0
        %v1047 = vadd.f32 0.0, %v1046
        %1048 = vmatmul.f32.gmra.mxu0 %v1009
        %v1049 = vpop.f32.mrf.mxu0
        %v1050 = vadd.f32 0.0, %v1049
        %1051 = vmatmul.f32.gmra.mxu0 %v1012
        %v1052 = vpop.f32.mrf.mxu0
        %v1053 = vadd.f32 0.0, %v1052
        %1054 = vdwg.mxu0
        %v1055 = vadd.f32 %v980, %v1032
        %v1056 = vadd.f32 %v981, %v1035
        %v1057 = vadd.f32 %v982, %v1038
        %v1058 = vadd.f32 %v983, %v1041
        %v1059 = vadd.f32 %v984, %v1044
        %v1060 = vadd.f32 %v985, %v1047
        %v1061 = vadd.f32 %v986, %v1050
        %v1062 = vadd.f32 %v987, %v1053
        %1063 = vst.msk [vmem:[#allocation3] sm:$0xff] %vm366, %v1055
        %1064 = vst.msk [vmem:[#allocation3 + $0x8] sm:$0xff] %vm366, %v1056
        %1065 = vst.msk [vmem:[#allocation3 + $0x10] sm:$0xff] %vm366, %v1057
        %1066 = vst.msk [vmem:[#allocation3 + $0x18] sm:$0xff] %vm366, %v1058
        %1067 = vst.msk [vmem:[#allocation3 + $0x20] sm:$0xff] %vm366, %v1059
        %1068 = vst.msk [vmem:[#allocation3 + $0x28] sm:$0xff] %vm366, %v1060
        %1069 = vst.msk [vmem:[#allocation3 + $0x30] sm:$0xff] %vm366, %v1061
        %1070 = vst.msk [vmem:[#allocation3 + $0x38] sm:$0xff] %vm366, %v1062
        %s1071 = scalar_lea.vmem [#allocation2], 32
        %v1072 = vld [vmem:[%s1071] sm:$0xff]
        %v1073 = vld [vmem:[%s1071 + $0x10] sm:$0xff]
        %v1074 = vld [vmem:[%s1071 + $0x20] sm:$0xff]
        %v1075 = vld [vmem:[%s1071 + $0x30] sm:$0xff]
        %v1076 = vld [vmem:[%s1071 + $0x40] sm:$0xff]
        %v1077 = vld [vmem:[%s1071 + $0x50] sm:$0xff]
        %v1078 = vld [vmem:[%s1071 + $0x60] sm:$0xff]
        %v1079 = vld [vmem:[%s1071 + $0x70] sm:$0xff]
        %v1080 = vld [vmem:[#allocation3] sm:$0xff]
        %v1081 = vld [vmem:[#allocation3 + $0x8] sm:$0xff]
        %v1082 = vld [vmem:[#allocation3 + $0x10] sm:$0xff]
        %v1083 = vld [vmem:[#allocation3 + $0x18] sm:$0xff]
        %v1084 = vld [vmem:[#allocation3 + $0x20] sm:$0xff]
        %v1085 = vld [vmem:[#allocation3 + $0x28] sm:$0xff]
        %v1086 = vld [vmem:[#allocation3 + $0x30] sm:$0xff]
        %v1087 = vld [vmem:[#allocation3 + $0x38] sm:$0xff]
        %s1088 = scalar_lea.vmem %s3, 48
        %v1089 = vld [vmem:[%s1088] sm:$0xff]
        %v1091 = vsel %vm366, %v1072, 0
        %v1094 = vsel %vm366, %v1073, 0
        %v1097 = vsel %vm366, %v1074, 0
        %v1100 = vsel %vm366, %v1075, 0
        %v1103 = vsel %vm366, %v1076, 0
        %v1106 = vsel %vm366, %v1077, 0
        %v1109 = vsel %vm366, %v1078, 0
        %v1112 = vsel %vm366, %v1079, 0
        %1114 = vmatpush.msra.mxu0 0.0
        %1115 = vmatpush.msra.mxu0 0.0
        %1116 = vmatpush.msra.mxu0 0.0
        %1117 = vmatpush.msra.mxu0 0.0
        %1118 = vmatpush.msra.mxu0 0.0
        %1119 = vmatpush.msra.mxu0 0.0
        %1120 = vmatpush.msra.mxu0 0.0
        %1121 = vmatpush.msra.mxu0 0.0
        %1122 = vmatpush.msra.mxu0 0.0
        %1123 = vmatpush.msra.mxu0 0.0
        %1124 = vmatpush.msra.mxu0 0.0
        %1125 = vmatpush.msra.mxu0 0.0
        %1126 = vmatpush.msra.mxu0 0.0
        %1127 = vmatpush.msra.mxu0 0.0
        %1128 = vmatpush.msra.mxu0 0.0
        %1129 = vmatpush.msra.mxu0 %v1089
        %1130 = vmatmul.f32.gmra.mxu0 %v1091
        %v1131 = vpop.f32.mrf.mxu0
        %v1132 = vadd.f32 0.0, %v1131
        %1133 = vmatmul.f32.gmra.mxu0 %v1094
        %v1134 = vpop.f32.mrf.mxu0
        %v1135 = vadd.f32 0.0, %v1134
        %1136 = vmatmul.f32.gmra.mxu0 %v1097
        %v1137 = vpop.f32.mrf.mxu0
        %v1138 = vadd.f32 0.0, %v1137
        %1139 = vmatmul.f32.gmra.mxu0 %v1100
        %v1140 = vpop.f32.mrf.mxu0
        %v1141 = vadd.f32 0.0, %v1140
        %1142 = vmatmul.f32.gmra.mxu0 %v1103
        %v1143 = vpop.f32.mrf.mxu0
        %v1144 = vadd.f32 0.0, %v1143
        %1145 = vmatmul.f32.gmra.mxu0 %v1106
        %v1146 = vpop.f32.mrf.mxu0
        %v1147 = vadd.f32 0.0, %v1146
        %1148 = vmatmul.f32.gmra.mxu0 %v1109
        %v1149 = vpop.f32.mrf.mxu0
        %v1150 = vadd.f32 0.0, %v1149
        %1151 = vmatmul.f32.gmra.mxu0 %v1112
        %v1152 = vpop.f32.mrf.mxu0
        %v1153 = vadd.f32 0.0, %v1152
        %1154 = vdwg.mxu0
        %v1155 = vadd.f32 %v1080, %v1132
        %v1156 = vadd.f32 %v1081, %v1135
        %v1157 = vadd.f32 %v1082, %v1138
        %v1158 = vadd.f32 %v1083, %v1141
        %v1159 = vadd.f32 %v1084, %v1144
        %v1160 = vadd.f32 %v1085, %v1147
        %v1161 = vadd.f32 %v1086, %v1150
        %v1162 = vadd.f32 %v1087, %v1153
        %1163 = vst.msk [vmem:[#allocation3] sm:$0xff] %vm366, %v1155
        %1164 = vst.msk [vmem:[#allocation3 + $0x8] sm:$0xff] %vm366, %v1156
        %1165 = vst.msk [vmem:[#allocation3 + $0x10] sm:$0xff] %vm366, %v1157
        %1166 = vst.msk [vmem:[#allocation3 + $0x18] sm:$0xff] %vm366, %v1158
        %1167 = vst.msk [vmem:[#allocation3 + $0x20] sm:$0xff] %vm366, %v1159
        %1168 = vst.msk [vmem:[#allocation3 + $0x28] sm:$0xff] %vm366, %v1160
        %1169 = vst.msk [vmem:[#allocation3 + $0x30] sm:$0xff] %vm366, %v1161
        %1170 = vst.msk [vmem:[#allocation3 + $0x38] sm:$0xff] %vm366, %v1162
        %v1171 = vld [vmem:[%s1071 + $0x1] sm:$0xff]
        %v1172 = vld [vmem:[%s1071 + $0x11] sm:$0xff]
        %v1173 = vld [vmem:[%s1071 + $0x21] sm:$0xff]
        %v1174 = vld [vmem:[%s1071 + $0x31] sm:$0xff]
        %v1175 = vld [vmem:[%s1071 + $0x41] sm:$0xff]
        %v1176 = vld [vmem:[%s1071 + $0x51] sm:$0xff]
        %v1177 = vld [vmem:[%s1071 + $0x61] sm:$0xff]
        %v1178 = vld [vmem:[%s1071 + $0x71] sm:$0xff]
        %v1179 = vld [vmem:[#allocation3] sm:$0xff]
        %v1180 = vld [vmem:[#allocation3 + $0x8] sm:$0xff]
        %v1181 = vld [vmem:[#allocation3 + $0x10] sm:$0xff]
        %v1182 = vld [vmem:[#allocation3 + $0x18] sm:$0xff]
        %v1183 = vld [vmem:[#allocation3 + $0x20] sm:$0xff]
        %v1184 = vld [vmem:[#allocation3 + $0x28] sm:$0xff]
        %v1185 = vld [vmem:[#allocation3 + $0x30] sm:$0xff]
        %v1186 = vld [vmem:[#allocation3 + $0x38] sm:$0xff]
        %s1187 = scalar_lea.vmem %s3, 56
        %v1188 = vld [vmem:[%s1187] sm:$0xff]
        %v1190 = vsel %vm366, %v1171, 0
        %v1193 = vsel %vm366, %v1172, 0
        %v1196 = vsel %vm366, %v1173, 0
        %v1199 = vsel %vm366, %v1174, 0
        %v1202 = vsel %vm366, %v1175, 0
        %v1205 = vsel %vm366, %v1176, 0
        %v1208 = vsel %vm366, %v1177, 0
        %v1211 = vsel %vm366, %v1178, 0
        %1213 = vmatpush.msra.mxu0 0.0
        %1214 = vmatpush.msra.mxu0 0.0
        %1215 = vmatpush.msra.mxu0 0.0
        %1216 = vmatpush.msra.mxu0 0.0
        %1217 = vmatpush.msra.mxu0 0.0
        %1218 = vmatpush.msra.mxu0 0.0
        %1219 = vmatpush.msra.mxu0 0.0
        %1220 = vmatpush.msra.mxu0 0.0
        %1221 = vmatpush.msra.mxu0 0.0
        %1222 = vmatpush.msra.mxu0 0.0
        %1223 = vmatpush.msra.mxu0 0.0
        %1224 = vmatpush.msra.mxu0 0.0
        %1225 = vmatpush.msra.mxu0 0.0
        %1226 = vmatpush.msra.mxu0 0.0
        %1227 = vmatpush.msra.mxu0 0.0
        %1228 = vmatpush.msra.mxu0 %v1188
        %1229 = vmatmul.f32.gmra.mxu0 %v1190
        %v1230 = vpop.f32.mrf.mxu0
        %v1231 = vadd.f32 0.0, %v1230
        %1232 = vmatmul.f32.gmra.mxu0 %v1193
        %v1233 = vpop.f32.mrf.mxu0
        %v1234 = vadd.f32 0.0, %v1233
        %1235 = vmatmul.f32.gmra.mxu0 %v1196
        %v1236 = vpop.f32.mrf.mxu0
        %v1237 = vadd.f32 0.0, %v1236
        %1238 = vmatmul.f32.gmra.mxu0 %v1199
        %v1239 = vpop.f32.mrf.mxu0
        %v1240 = vadd.f32 0.0, %v1239
        %1241 = vmatmul.f32.gmra.mxu0 %v1202
        %v1242 = vpop.f32.mrf.mxu0
        %v1243 = vadd.f32 0.0, %v1242
        %1244 = vmatmul.f32.gmra.mxu0 %v1205
        %v1245 = vpop.f32.mrf.mxu0
        %v1246 = vadd.f32 0.0, %v1245
        %1247 = vmatmul.f32.gmra.mxu0 %v1208
        %v1248 = vpop.f32.mrf.mxu0
        %v1249 = vadd.f32 0.0, %v1248
        %1250 = vmatmul.f32.gmra.mxu0 %v1211
        %v1251 = vpop.f32.mrf.mxu0
        %v1252 = vadd.f32 0.0, %v1251
        %1253 = vdwg.mxu0
        %v1254 = vadd.f32 %v1179, %v1231
        %v1255 = vadd.f32 %v1180, %v1234
        %v1256 = vadd.f32 %v1181, %v1237
        %v1257 = vadd.f32 %v1182, %v1240
        %v1258 = vadd.f32 %v1183, %v1243
        %v1259 = vadd.f32 %v1184, %v1246
        %v1260 = vadd.f32 %v1185, %v1249
        %v1261 = vadd.f32 %v1186, %v1252
        %1262 = vst.msk [vmem:[#allocation3] sm:$0xff] %vm366, %v1254
        %1263 = vst.msk [vmem:[#allocation3 + $0x8] sm:$0xff] %vm366, %v1255
        %1264 = vst.msk [vmem:[#allocation3 + $0x10] sm:$0xff] %vm366, %v1256
        %1265 = vst.msk [vmem:[#allocation3 + $0x18] sm:$0xff] %vm366, %v1257
        %1266 = vst.msk [vmem:[#allocation3 + $0x20] sm:$0xff] %vm366, %v1258
        %1267 = vst.msk [vmem:[#allocation3 + $0x28] sm:$0xff] %vm366, %v1259
        %1268 = vst.msk [vmem:[#allocation3 + $0x30] sm:$0xff] %vm366, %v1260
        %1269 = vst.msk [vmem:[#allocation3 + $0x38] sm:$0xff] %vm366, %v1261
        %v1270 = vld [vmem:[%s1071 + $0x2] sm:$0xff]
        %v1271 = vld [vmem:[%s1071 + $0x12] sm:$0xff]
        %v1272 = vld [vmem:[%s1071 + $0x22] sm:$0xff]
        %v1273 = vld [vmem:[%s1071 + $0x32] sm:$0xff]
        %v1274 = vld [vmem:[%s1071 + $0x42] sm:$0xff]
        %v1275 = vld [vmem:[%s1071 + $0x52] sm:$0xff]
        %v1276 = vld [vmem:[%s1071 + $0x62] sm:$0xff]
        %v1277 = vld [vmem:[%s1071 + $0x72] sm:$0xff]
        %v1278 = vld [vmem:[#allocation3] sm:$0xff]
        %v1279 = vld [vmem:[#allocation3 + $0x8] sm:$0xff]
        %v1280 = vld [vmem:[#allocation3 + $0x10] sm:$0xff]
        %v1281 = vld [vmem:[#allocation3 + $0x18] sm:$0xff]
        %v1282 = vld [vmem:[#allocation3 + $0x20] sm:$0xff]
        %v1283 = vld [vmem:[#allocation3 + $0x28] sm:$0xff]
        %v1284 = vld [vmem:[#allocation3 + $0x30] sm:$0xff]
        %v1285 = vld [vmem:[#allocation3 + $0x38] sm:$0xff]
        %s1286 = scalar_lea.vmem %s3, 64
        %v1287 = vld [vmem:[%s1286] sm:$0xff]
        %v1289 = vsel %vm366, %v1270, 0
        %v1292 = vsel %vm366, %v1271, 0
        %v1295 = vsel %vm366, %v1272, 0
        %v1298 = vsel %vm366, %v1273, 0
        %v1301 = vsel %vm366, %v1274, 0
        %v1304 = vsel %vm366, %v1275, 0
        %v1307 = vsel %vm366, %v1276, 0
        %v1310 = vsel %vm366, %v1277, 0
        %1312 = vmatpush.msra.mxu0 0.0
        %1313 = vmatpush.msra.mxu0 0.0
        %1314 = vmatpush.msra.mxu0 0.0
        %1315 = vmatpush.msra.mxu0 0.0
        %1316 = vmatpush.msra.mxu0 0.0
        %1317 = vmatpush.msra.mxu0 0.0
        %1318 = vmatpush.msra.mxu0 0.0
        %1319 = vmatpush.msra.mxu0 0.0
        %1320 = vmatpush.msra.mxu0 0.0
        %1321 = vmatpush.msra.mxu0 0.0
        %1322 = vmatpush.msra.mxu0 0.0
        %1323 = vmatpush.msra.mxu0 0.0
        %1324 = vmatpush.msra.mxu0 0.0
        %1325 = vmatpush.msra.mxu0 0.0
        %1326 = vmatpush.msra.mxu0 0.0
        %1327 = vmatpush.msra.mxu0 %v1287
        %1328 = vmatmul.f32.gmra.mxu0 %v1289
        %v1329 = vpop.f32.mrf.mxu0
        %v1330 = vadd.f32 0.0, %v1329
        %1331 = vmatmul.f32.gmra.mxu0 %v1292
        %v1332 = vpop.f32.mrf.mxu0
        %v1333 = vadd.f32 0.0, %v1332
        %1334 = vmatmul.f32.gmra.mxu0 %v1295
        %v1335 = vpop.f32.mrf.mxu0
        %v1336 = vadd.f32 0.0, %v1335
        %1337 = vmatmul.f32.gmra.mxu0 %v1298
        %v1338 = vpop.f32.mrf.mxu0
        %v1339 = vadd.f32 0.0, %v1338
        %1340 = vmatmul.f32.gmra.mxu0 %v1301
        %v1341 = vpop.f32.mrf.mxu0
        %v1342 = vadd.f32 0.0, %v1341
        %1343 = vmatmul.f32.gmra.mxu0 %v1304
        %v1344 = vpop.f32.mrf.mxu0
        %v1345 = vadd.f32 0.0, %v1344
        %1346 = vmatmul.f32.gmra.mxu0 %v1307
        %v1347 = vpop.f32.mrf.mxu0
        %v1348 = vadd.f32 0.0, %v1347
        %1349 = vmatmul.f32.gmra.mxu0 %v1310
        %v1350 = vpop.f32.mrf.mxu0
        %v1351 = vadd.f32 0.0, %v1350
        %1352 = vdwg.mxu0
        %v1353 = vadd.f32 %v1278, %v1330
        %v1354 = vadd.f32 %v1279, %v1333
        %v1355 = vadd.f32 %v1280, %v1336
        %v1356 = vadd.f32 %v1281, %v1339
        %v1357 = vadd.f32 %v1282, %v1342
        %v1358 = vadd.f32 %v1283, %v1345
        %v1359 = vadd.f32 %v1284, %v1348
        %v1360 = vadd.f32 %v1285, %v1351
        %1361 = vst.msk [vmem:[#allocation3] sm:$0xff] %vm366, %v1353
        %1362 = vst.msk [vmem:[#allocation3 + $0x8] sm:$0xff] %vm366, %v1354
        %1363 = vst.msk [vmem:[#allocation3 + $0x10] sm:$0xff] %vm366, %v1355
        %1364 = vst.msk [vmem:[#allocation3 + $0x18] sm:$0xff] %vm366, %v1356
        %1365 = vst.msk [vmem:[#allocation3 + $0x20] sm:$0xff] %vm366, %v1357
        %1366 = vst.msk [vmem:[#allocation3 + $0x28] sm:$0xff] %vm366, %v1358
        %1367 = vst.msk [vmem:[#allocation3 + $0x30] sm:$0xff] %vm366, %v1359
        %1368 = vst.msk [vmem:[#allocation3 + $0x38] sm:$0xff] %vm366, %v1360
        %v1369 = vld [vmem:[#allocation3] sm:$0xff]
        %v1370 = vld [vmem:[#allocation3 + $0x8] sm:$0xff]
        %v1371 = vld [vmem:[#allocation3 + $0x10] sm:$0xff]
        %v1372 = vld [vmem:[#allocation3 + $0x18] sm:$0xff]
        %v1373 = vld [vmem:[#allocation3 + $0x20] sm:$0xff]
        %v1374 = vld [vmem:[#allocation3 + $0x28] sm:$0xff]
        %v1375 = vld [vmem:[#allocation3 + $0x30] sm:$0xff]
        %v1376 = vld [vmem:[#allocation3 + $0x38] sm:$0xff]
        %v1377 = vld [vmem:[%s4] sm:$0x1]
        %v1379 = vperm.slane %v1377, 0
        %v1381 = vadd.f32 %v1369, %v1379
        %v1382 = vadd.f32 %v1370, %v1379
        %v1383 = vadd.f32 %v1371, %v1379
        %v1384 = vadd.f32 %v1372, %v1379
        %v1385 = vadd.f32 %v1373, %v1379
        %v1386 = vadd.f32 %v1374, %v1379
        %v1387 = vadd.f32 %v1375, %v1379
        %v1388 = vadd.f32 %v1376, %v1379
        %v1389 = vmax.f32 %v1381, 0.0
        %v1390 = vmax.f32 %v1382, 0.0
        %v1391 = vmax.f32 %v1383, 0.0
        %v1392 = vmax.f32 %v1384, 0.0
        %v1393 = vmax.f32 %v1385, 0.0
        %v1394 = vmax.f32 %v1386, 0.0
        %v1395 = vmax.f32 %v1387, 0.0
        %v1396 = vmax.f32 %v1388, 0.0
        %v1397 = vld [vmem:[%s5] sm:$0xff]
        %v1398 = vld [vmem:[%s6] sm:$0x1]
        %v1400 = vperm.slane %v1398, 0
        %v1403 = vsel %vm366, %v1389, 0
        %v1406 = vsel %vm366, %v1390, 0
        %v1409 = vsel %vm366, %v1391, 0
        %v1412 = vsel %vm366, %v1392, 0
        %v1415 = vsel %vm366, %v1393, 0
        %v1418 = vsel %vm366, %v1394, 0
        %v1421 = vsel %vm366, %v1395, 0
        %v1424 = vsel %vm366, %v1396, 0
        %1426 = vmatpush.msra.mxu0 0.0
        %1427 = vmatpush.msra.mxu0 0.0
        %1428 = vmatpush.msra.mxu0 0.0
        %1429 = vmatpush.msra.mxu0 0.0
        %1430 = vmatpush.msra.mxu0 0.0
        %1431 = vmatpush.msra.mxu0 0.0
        %1432 = vmatpush.msra.mxu0 0.0
        %1433 = vmatpush.msra.mxu0 0.0
        %1434 = vmatpush.msra.mxu0 0.0
        %1435 = vmatpush.msra.mxu0 0.0
        %1436 = vmatpush.msra.mxu0 0.0
        %1437 = vmatpush.msra.mxu0 0.0
        %1438 = vmatpush.msra.mxu0 0.0
        %1439 = vmatpush.msra.mxu0 0.0
        %1440 = vmatpush.msra.mxu0 0.0
        %1441 = vmatpush.msra.mxu0 %v1397
        %1442 = vmatmul.f32.gmra.mxu0 %v1403
        %v1443 = vpop.f32.mrf.mxu0
        %v1444 = vadd.f32 %v1400, %v1443
        %1445 = vmatmul.f32.gmra.mxu0 %v1406
        %v1446 = vpop.f32.mrf.mxu0
        %v1447 = vadd.f32 %v1400, %v1446
        %1448 = vmatmul.f32.gmra.mxu0 %v1409
        %v1449 = vpop.f32.mrf.mxu0
        %v1450 = vadd.f32 %v1400, %v1449
        %1451 = vmatmul.f32.gmra.mxu0 %v1412
        %v1452 = vpop.f32.mrf.mxu0
        %v1453 = vadd.f32 %v1400, %v1452
        %1454 = vmatmul.f32.gmra.mxu0 %v1415
        %v1455 = vpop.f32.mrf.mxu0
        %v1456 = vadd.f32 %v1400, %v1455
        %1457 = vmatmul.f32.gmra.mxu0 %v1418
        %v1458 = vpop.f32.mrf.mxu0
        %v1459 = vadd.f32 %v1400, %v1458
        %1460 = vmatmul.f32.gmra.mxu0 %v1421
        %v1461 = vpop.f32.mrf.mxu0
        %v1462 = vadd.f32 %v1400, %v1461
        %1463 = vmatmul.f32.gmra.mxu0 %v1424
        %v1464 = vpop.f32.mrf.mxu0
        %v1465 = vadd.f32 %v1400, %v1464
        %1466 = vdwg.mxu0
        %v1467 = vld [vmem:[%s7] sm:$0xff]
        %v1468 = vld [vmem:[%s8] sm:$0x1]
        %v1470 = vperm.slane %v1468, 0
        %1472 = vmatpush.msra.mxu0 0.0
        %1473 = vmatpush.msra.mxu0 0.0
        %1474 = vmatpush.msra.mxu0 0.0
        %1475 = vmatpush.msra.mxu0 0.0
        %1476 = vmatpush.msra.mxu0 0.0
        %1477 = vmatpush.msra.mxu0 0.0
        %1478 = vmatpush.msra.mxu0 0.0
        %1479 = vmatpush.msra.mxu0 0.0
        %1480 = vmatpush.msra.mxu0 0.0
        %1481 = vmatpush.msra.mxu0 0.0
        %1482 = vmatpush.msra.mxu0 0.0
        %1483 = vmatpush.msra.mxu0 0.0
        %1484 = vmatpush.msra.mxu0 0.0
        %1485 = vmatpush.msra.mxu0 0.0
        %1486 = vmatpush.msra.mxu0 0.0
        %1487 = vmatpush.msra.mxu0 %v1467
        %1488 = vmatmul.f32.gmra.mxu0 %v368
        %v1489 = vpop.f32.mrf.mxu0
        %v1490 = vadd.f32 %v1470, %v1489
        %1491 = vmatmul.f32.gmra.mxu0 %v371
        %v1492 = vpop.f32.mrf.mxu0
        %v1493 = vadd.f32 %v1470, %v1492
        %1494 = vmatmul.f32.gmra.mxu0 %v374
        %v1495 = vpop.f32.mrf.mxu0
        %v1496 = vadd.f32 %v1470, %v1495
        %1497 = vmatmul.f32.gmra.mxu0 %v377
        %v1498 = vpop.f32.mrf.mxu0
        %v1499 = vadd.f32 %v1470, %v1498
        %1500 = vmatmul.f32.gmra.mxu0 %v380
        %v1501 = vpop.f32.mrf.mxu0
        %v1502 = vadd.f32 %v1470, %v1501
        %1503 = vmatmul.f32.gmra.mxu0 %v383
        %v1504 = vpop.f32.mrf.mxu0
        %v1505 = vadd.f32 %v1470, %v1504
        %1506 = vmatmul.f32.gmra.mxu0 %v386
        %v1507 = vpop.f32.mrf.mxu0
        %v1508 = vadd.f32 %v1470, %v1507
        %1509 = vmatmul.f32.gmra.mxu0 %v389
        %v1510 = vpop.f32.mrf.mxu0
        %v1511 = vadd.f32 %v1470, %v1510
        %1512 = vdwg.mxu0
        %v1513 = vadd.f32 %v1444, %v1490
        %v1514 = vadd.f32 %v1447, %v1493
        %v1515 = vadd.f32 %v1450, %v1496
        %v1516 = vadd.f32 %v1453, %v1499
        %v1517 = vadd.f32 %v1456, %v1502
        %v1518 = vadd.f32 %v1459, %v1505
        %v1519 = vadd.f32 %v1462, %v1508
        %v1520 = vadd.f32 %v1465, %v1511
        %v1521 = vmax.f32 %v1513, 0.0
        %v1522 = vmax.f32 %v1514, 0.0
        %v1523 = vmax.f32 %v1515, 0.0
        %v1524 = vmax.f32 %v1516, 0.0
        %v1525 = vmax.f32 %v1517, 0.0
        %v1526 = vmax.f32 %v1518, 0.0
        %v1527 = vmax.f32 %v1519, 0.0
        %v1528 = vmax.f32 %v1520, 0.0
        %vm1529 = vcmask 130048
        %1530 = vst.msk [vmem:[%s352] sm:$0xff] %vm1529, %v1521
        %1531 = vst.msk [vmem:[%s352 + $0x8] sm:$0xff] %vm1529, %v1522
        %1532 = vst.msk [vmem:[%s352 + $0x10] sm:$0xff] %vm1529, %v1523
        %1533 = vst.msk [vmem:[%s352 + $0x18] sm:$0xff] %vm1529, %v1524
        %1534 = vst.msk [vmem:[%s352 + $0x20] sm:$0xff] %vm1529, %v1525
        %1535 = vst.msk [vmem:[%s352 + $0x28] sm:$0xff] %vm1529, %v1526
        %1536 = vst.msk [vmem:[%s352 + $0x30] sm:$0xff] %vm1529, %v1527
        %1537 = vst.msk [vmem:[%s352 + $0x38] sm:$0xff] %vm1529, %v1528
        %s1538 = sand.u32 %s228, 1
        %s1539 = scalar_lea.sflag [#allocation6], %s1538
        %s1540 = sand.u32 %s228, 1
        %s1541 = smul.addr %s1540, 64
        %s1542 = scalar_lea.vmem [#allocation7], %s1541
        // Predicated region
        $region61: #{tpu_custom_call.1} parent=55 // pred_check
          %p1543 = pneg %p238
        $region62: #{tpu_custom_call.1} parent=55 // pred_check_branch
          %1545 = sbr.rel (%p1543) target = $region64
        $region63: #{tpu_custom_call.1} parent=55 // pred_region
          %1547 = vsyncadd %s1539, 0
          %s1548 = smul.addr %s26, 8
          %s1549 = smul.addr %s1548, 8
          %s1550 = scalar_lea.hbm %s9, %s1549
          %s1551 = sshll.u32 %s1542, 4
          %s1552 = int_to_ptr.vmem [resolvable:$true] %s1551
          %s1553 = sshll.u32 %s1550, 4
          %s1554 = int_to_ptr.hbm [resolvable:$true] %s1553
          %1559 = dma.vmem_to_hbm [thread:$0]  %s1552, 1024, %s1554, %s1539, 128, 128, 8
        $region64: #{tpu_custom_call.1} parent=55 // pred_fallthru
          _
      $region56: #{tpu_custom_call.1} parent=5 // pred_fallthru
        _
      %p1560 = scmp.le.s32.totalorder 2, %s21
      // Predicated region
      $region65: #{tpu_custom_call.1} parent=5 // pred_check
        %p1561 = pneg %p1560
      $region66: #{tpu_custom_call.1} parent=5 // pred_check_branch
        %1563 = sbr.rel (%p1561) target = $region68
      $region67: #{tpu_custom_call.1} parent=5 // pred_region
        %s1564 = ssub.s32 %s21, 2
        // Predicated region
        $region69: #{tpu_custom_call.1} parent=67 // pred_check
          %p1565 = pneg %p244
        $region70: #{tpu_custom_call.1} parent=67 // pred_check_branch
          %1567 = sbr.rel (%p1565) target = $region72
        $region71: #{tpu_custom_call.1} parent=67 // pred_region
          %s1568 = sand.u32 %s229, 1
          %s1569 = scalar_lea.sflag [#allocation6], %s1568
          %s1570 = sand.u32 %s229, 1
          %s1571 = smul.addr %s1570, 64
          %s1572 = scalar_lea.vmem [#allocation7], %s1571
          %1574 = dma.done %s1569, 1024
        $region72: #{tpu_custom_call.1} parent=67 // pred_fallthru
          _
      $region68: #{tpu_custom_call.1} parent=5 // pred_fallthru
        _
    $region6: #{tpu_custom_call.1} parent=1 // loop_footer
      %s25 = sadd.s32 1, %s21
    $region7: #{tpu_custom_call.1} parent=1 // loop_footer_branch
      %20 = sbr.rel target = $region3
    $region8: #{tpu_custom_call.1} parent=1 // loop_exit
      _
    %1575 = vsyncpa [#allocation5], 1
    %s1576 = scalar_lea.sflag [#allocation5], 1
    %1577 = vsyncpa %s1576, 1
    %1578 = vsyncpa [#allocation6], 1
    %s1579 = scalar_lea.sflag [#allocation6], 1
    %1580 = vsyncpa %s1579, 1

</llo_original>
